<compile_context>
chip_gen: v5e
topology: v5e:2x2
jax: 0.10.0
libtpu: 0.0.40
codegen_flags: <defaults>
</compile_context>

<pallas_src>
import functools

import jax
import jax.numpy as jnp
from jax import lax
from jax.experimental import pallas as pl
from jax.experimental.pallas import tpu as pltpu


def _fold_bn(gamma, beta, mean, var, eps=1e-5):
    scale = gamma * lax.rsqrt(var + eps)
    shift = beta - mean * scale
    return scale, shift


def inception_res_kernel(x_ref, wb_ref, bb_ref, w6b_ref, w6r_ref, b6_ref,
                         o_ref, y_ref, *, out_len, ks_max, pad_left, pad_max):
    """Per-batch-element block.

    x_ref:  (Lpad, Cin)        bf16, zero-padded input (sublane-aligned left pad)
    wb_ref: (ks_max, Cin, 5F)  bf16, packed branch weights (BN scale folded in)
    bb_ref: (1, 5F)            f32,  folded BN shifts for the 5 branches
    w6b_ref:(5F, F) / w6r_ref:(Cin, F)  bf16, split 1x1 fuse-conv weights (BN scale folded)
    b6_ref: (1, F)             f32,  folded BN shift for c6
    o_ref:  (L//2, F)          f32 output;  y_ref: (L, F) f32 scratch for the pool.
    """
    L = out_len

    # --- fused 5-branch "same" Conv1d: one (L,Cin)x(Cin,5F) MXU dot per tap, f32 accumulate ---
    start = pad_left - pad_max                                   # static python int
    acc = jnp.zeros((L, wb_ref.shape[-1]), jnp.float32)
    for t in range(ks_max):                                      # 19 taps, unrolled at trace time
        xs = x_ref[pl.ds(start + t, L), :]                       # (L, Cin) bf16
        acc = acc + jnp.dot(xs, wb_ref[t], preferred_element_type=jnp.float32)

    # --- folded BatchNorm shift + SiLU (f32 elementwise) ---
    h = acc + bb_ref[...]
    h = h * jax.nn.sigmoid(h)                                    # (L, 5F)

    # --- c6: 1x1 conv + BN + SiLU, without lane-axis concat:
    #     [branches | x] @ w6  ==  branches @ w6_branch + x @ w6_resid
    x_center = x_ref[pl.ds(pad_left, L), :]                      # (L, Cin) bf16 residual path
    y = jnp.dot(h.astype(jnp.bfloat16), w6b_ref[...], preferred_element_type=jnp.float32)
    y = y + jnp.dot(x_center, w6r_ref[...], preferred_element_type=jnp.float32)
    y = y + b6_ref[...]
    y = y * jax.nn.sigmoid(y)                                    # (L, F) f32

    # --- MaxPool1d(kernel_size=2, stride=2): strided sublane loads + one VPU max ---
    y_ref[...] = y
    o_ref[...] = jnp.maximum(y_ref[pl.ds(0, L // 2, 2), :],
                             y_ref[pl.ds(1, L // 2, 2), :])


def init_params(key, in_channels, feat, k):
    """Deterministic synthetic parameters matching the PyTorch module shapes."""
    assert k % 2 == 1, "odd kernel size -> symmetric 'same' padding"
    kernel_sizes = [k, k + 2, k + 4, k + 8, k + 16]
    ccat = 5 * feat + in_channels
    keys = jax.random.split(key, 6)
    p = {"conv_w": [], "gamma": [], "beta": [], "mean": [], "var": [],
         "kernel_sizes": kernel_sizes}
    for i, ks in enumerate(kernel_sizes):
        sk = jax.random.split(keys[i], 5)
        p["conv_w"].append(0.2 * jax.random.normal(sk[0], (feat, in_channels, ks), jnp.float32))
        p["gamma"].append(1.0 + 0.1 * jax.random.normal(sk[1], (feat,), jnp.float32))
        p["beta"].append(0.1 * jax.random.normal(sk[2], (feat,), jnp.float32))
        p["mean"].append(0.1 * jax.random.normal(sk[3], (feat,), jnp.float32))
        p["var"].append(0.5 + jnp.abs(jax.random.normal(sk[4], (feat,), jnp.float32)))
    sk = jax.random.split(keys[5], 5)
    p["conv6_w"] = 0.2 * jax.random.normal(sk[0], (feat, ccat), jnp.float32)  # 1x1 conv (ks squeezed)
    p["gamma6"] = 1.0 + 0.1 * jax.random.normal(sk[1], (feat,), jnp.float32)
    p["beta6"] = 0.1 * jax.random.normal(sk[2], (feat,), jnp.float32)
    p["mean6"] = 0.1 * jax.random.normal(sk[3], (feat,), jnp.float32)
    p["var6"] = 0.5 + jnp.abs(jax.random.normal(sk[4], (feat,), jnp.float32))
    return p


def inception_res_block(x_ncl, params):
    """x_ncl: (N, C_in, L) float32 -> (N, feat, L//2) float32."""
    kernel_sizes = params["kernel_sizes"]
    nb = len(kernel_sizes)
    ks_max = max(kernel_sizes)
    pad_max = (ks_max - 1) // 2
    N, Cin, L = x_ncl.shape
    feat = params["conv_w"][0].shape[0]
    f5 = nb * feat
    assert L % 2 == 0

    # Sublane-aligned left padding; total padded length rounded up to a multiple of 8.
    pad_left = ((pad_max + 7) // 8) * 8
    l_pad = ((pad_left + L + pad_max + 7) // 8) * 8
    pad_right = l_pad - pad_left - L

    # Dropout1d -> identity (inference).  NCL -> NLC, pad, bf16 for the MXU (matmul-only use).
    x_nlc = jnp.transpose(x_ncl, (0, 2, 1)).astype(jnp.float32)
    x_pad = jnp.pad(x_nlc, ((0, 0), (pad_left, pad_right), (0, 0))).astype(jnp.bfloat16)

    # Pack the 5 branch conv weights (BN scale folded in) into one (ks_max, Cin, 5*feat) slab,
    # centered & zero-padded to ks_max; BN shifts into one (1, 5*feat) row.
    wb = jnp.zeros((ks_max, Cin, f5), jnp.float32)
    bb = jnp.zeros((1, f5), jnp.float32)
    for b, ks in enumerate(kernel_sizes):
        w = jnp.transpose(params["conv_w"][b], (2, 1, 0))                 # (ks, Cin, feat)
        s, sh = _fold_bn(params["gamma"][b], params["beta"][b],
                         params["mean"][b], params["var"][b])
        off = (ks_max - ks) // 2
        wb = wb.at[off:off + ks, :, b * feat:(b + 1) * feat].set(w * s[None, None, :])
        bb = bb.at[0, b * feat:(b + 1) * feat].set(sh)
    wb = wb.astype(jnp.bfloat16)

    # c6 (1x1 fuse conv): fold BN scale, split into branch-slab rows + residual rows.
    s6, sh6 = _fold_bn(params["gamma6"], params["beta6"], params["mean6"], params["var6"])
    w6 = jnp.transpose(params["conv6_w"], (1, 0)) * s6[None, :]           # (5*feat+Cin, feat)
    w6b = w6[:f5].astype(jnp.bfloat16)                                    # (5*feat, feat)
    w6r = w6[f5:].astype(jnp.bfloat16)                                    # (Cin,    feat)
    b6 = sh6.reshape(1, feat).astype(jnp.float32)

    kernel = functools.partial(inception_res_kernel, out_len=L, ks_max=ks_max,
                               pad_left=pad_left, pad_max=pad_max)

    # VMEM budget: 2x double-buffered per-step tiles + resident weights + scratch (+ margin),
    # clamped to <= 32 MiB so it is safe on v7x's 64 MiB physical VMEM as well.
    tile_bytes = 2 * (l_pad * Cin * 2 + (L // 2) * feat * 4)
    weight_bytes = wb.size * 2 + w6b.size * 2 + w6r.size * 2 + (bb.size + b6.size) * 4
    vmem_limit = int(min(32 * 1024 * 1024,
                         max(4 * 1024 * 1024,
                             8 * (tile_bytes + weight_bytes + L * feat * 4))))

    # TODO(synk): for long sequences, add an L-tile grid axis with an explicit 2*pad_max halo
    # (pl.Element index_map or manual halo DMA); full L per batch element fits VMEM here.
    out_nlf = pl.pallas_call(
        kernel,
        out_shape=jax.ShapeDtypeStruct((N, L // 2, feat), jnp.float32),
        grid_spec=pltpu.PrefetchScalarGridSpec(
            num_scalar_prefetch=0,
            grid=(N,),                                                    # batch on the grid
            in_specs=[
                pl.BlockSpec((None, l_pad, Cin), lambda n: (n, 0, 0)),    # x (per batch element)
                pl.BlockSpec((ks_max, Cin, f5), lambda n: (0, 0, 0)),     # packed branch weights
                pl.BlockSpec((1, f5), lambda n: (0, 0)),                  # branch BN shifts
                pl.BlockSpec((f5, feat), lambda n: (0, 0)),               # w6 branch rows
                pl.BlockSpec((Cin, feat), lambda n: (0, 0)),              # w6 residual rows
                pl.BlockSpec((1, feat), lambda n: (0, 0)),                # c6 BN shift
            ],
            out_specs=pl.BlockSpec((None, L // 2, feat), lambda n: (n, 0, 0)),
            scratch_shapes=[pltpu.VMEM((L, feat), jnp.float32)],
        ),
        compiler_params=pltpu.CompilerParams(
            dimension_semantics=("parallel",),
            vmem_limit_bytes=vmem_limit),
    )(x_pad, wb, bb, w6b, w6r, b6)
    return jnp.transpose(out_nlf, (0, 2, 1))                              # (N, feat, L//2)


def reference(x_ncl, params, eps=1e-5):
    """Pure-JAX (f32) reference of the PyTorch forward (eval mode)."""
    feats = []
    for b, ks in enumerate(params["kernel_sizes"]):
        pad = (ks - 1) // 2
        y = lax.conv_general_dilated(x_ncl, params["conv_w"][b], (1,), [(pad, pad)],
                                     dimension_numbers=("NCH", "OIH", "NCH"))
        s, sh = _fold_bn(params["gamma"][b], params["beta"][b],
                         params["mean"][b], params["var"][b], eps)
        y = y * s[None, :, None] + sh[None, :, None]
        feats.append(y * jax.nn.sigmoid(y))
    cat = jnp.concatenate(feats + [x_ncl], axis=1)
    y = jnp.einsum("ncl,fc->nfl", cat, params["conv6_w"])
    s6, sh6 = _fold_bn(params["gamma6"], params["beta6"], params["mean6"], params["var6"], eps)
    y = y * s6[None, :, None] + sh6[None, :, None]
    y = y * jax.nn.sigmoid(y)
    Nn, F, Ll = y.shape
    return y.reshape(Nn, F, Ll // 2, 2).max(axis=-1)


if __name__ == "__main__":
    key = jax.random.PRNGKey(0)
    N, Cin, L = 2, 4, 16          # batch, in_channels, sequence length
    feat, k = 8, 3                # InceptionResBlock(in_channels=4, feat=8, kernel_size=3, dropout=0.1)

    params = init_params(key, Cin, feat, k)
    x = jax.random.normal(jax.random.fold_in(key, 999), (N, Cin, L), jnp.float32)

    out = inception_res_block(x, params)
    out = jax.block_until_ready(out)
    assert out.shape == (N, feat, L // 2), out.shape

    ref = reference(x, params)
    # bf16 MXU operands (f32 accumulation) vs. a pure-f32 reference -> ~1e-2 level agreement.
    if not jnp.allclose(out, ref, rtol=2e-2, atol=2e-2):
        raise AssertionError("Pallas kernel does not match JAX reference")

    # TODO(synk): Dropout1d random channel masking (training mode) not implemented; eval-mode identity used.
    print("KERNEL_OK")
</pallas_src>

<mosaic_0001>
module attributes {stable_mosaic.version = 11 : i64} {
  func.func @inception_res_kernel(%arg0: i32, %arg1: memref<1x48x4xbf16, #tpu.memory_space<vmem>>, %arg2: memref<19x4x40xbf16, #tpu.memory_space<vmem>>, %arg3: memref<1x40xf32, #tpu.memory_space<vmem>>, %arg4: memref<40x8xbf16, #tpu.memory_space<vmem>>, %arg5: memref<4x8xbf16, #tpu.memory_space<vmem>>, %arg6: memref<1x8xf32, #tpu.memory_space<vmem>>, %arg7: memref<1x8x8xf32, #tpu.memory_space<vmem>>, %arg8: memref<16x8xf32, #tpu.memory_space<vmem>>) attributes {dimension_semantics = [#tpu.dimension_semantics<parallel>], iteration_bounds = array<i64: 2>, scalar_prefetch = 0 : i64, scratch_operands = 1 : i64, tpu.core_type = #tpu.core_type<tc>, window_params = [{transform_indices = @transform_0, window_bounds = array<i64: 1, 48, 4>}, {pipeline_mode = #tpu.pipeline_mode<synchronous>, transform_indices = @transform_1, window_bounds = array<i64: 19, 4, 40>}, {pipeline_mode = #tpu.pipeline_mode<synchronous>, transform_indices = @transform_2, window_bounds = array<i64: 1, 40>}, {pipeline_mode = #tpu.pipeline_mode<synchronous>, transform_indices = @transform_3, window_bounds = array<i64: 40, 8>}, {pipeline_mode = #tpu.pipeline_mode<synchronous>, transform_indices = @transform_4, window_bounds = array<i64: 4, 8>}, {pipeline_mode = #tpu.pipeline_mode<synchronous>, transform_indices = @transform_5, window_bounds = array<i64: 1, 8>}, {transform_indices = @transform_6, window_bounds = array<i64: 1, 8, 8>}]} {
    %cst = arith.constant 0.000000e+00 : f32
    %0 = vector.broadcast %cst : f32 to vector<16x40xf32>
    %c0 = arith.constant 0 : index
    %c7 = arith.constant 7 : index
    %c0_0 = arith.constant 0 : index
    %1 = vector.load %arg1[%c0, %c7, %c0_0] : memref<1x48x4xbf16, #tpu.memory_space<vmem>>, vector<1x16x4xbf16>
    %2 = vector.shape_cast %1 : vector<1x16x4xbf16> to vector<16x4xbf16>
    %c0_1 = arith.constant 0 : index
    %c0_2 = arith.constant 0 : index
    %c0_3 = arith.constant 0 : index
    %3 = vector.load %arg2[%c0_1, %c0_2, %c0_3] : memref<19x4x40xbf16, #tpu.memory_space<vmem>>, vector<1x4x40xbf16>
    %4 = vector.shape_cast %3 : vector<1x4x40xbf16> to vector<4x40xbf16>
    %cst_4 = arith.constant dense<0.000000e+00> : vector<16x40xf32>
    %5 = tpu.matmul %2, %4, %cst_4 {dimension_numbers = #tpu.dot_dimension_numbers<[1], [0], [0], [1], [0, 0, 1, 1], [], []>} : vector<16x4xbf16>, vector<4x40xbf16>, vector<16x40xf32> -> vector<16x40xf32>
    %6 = arith.addf %0, %5 : vector<16x40xf32>
    %c0_5 = arith.constant 0 : index
    %c8 = arith.constant 8 : index
    %c0_6 = arith.constant 0 : index
    %7 = vector.load %arg1[%c0_5, %c8, %c0_6] : memref<1x48x4xbf16, #tpu.memory_space<vmem>>, vector<1x16x4xbf16>
    %8 = vector.shape_cast %7 : vector<1x16x4xbf16> to vector<16x4xbf16>
    %c1 = arith.constant 1 : index
    %c0_7 = arith.constant 0 : index
    %c0_8 = arith.constant 0 : index
    %9 = vector.load %arg2[%c1, %c0_7, %c0_8] : memref<19x4x40xbf16, #tpu.memory_space<vmem>>, vector<1x4x40xbf16>
    %10 = vector.shape_cast %9 : vector<1x4x40xbf16> to vector<4x40xbf16>
    %cst_9 = arith.constant dense<0.000000e+00> : vector<16x40xf32>
    %11 = tpu.matmul %8, %10, %cst_9 {dimension_numbers = #tpu.dot_dimension_numbers<[1], [0], [0], [1], [0, 0, 1, 1], [], []>} : vector<16x4xbf16>, vector<4x40xbf16>, vector<16x40xf32> -> vector<16x40xf32>
    %12 = arith.addf %6, %11 : vector<16x40xf32>
    %c0_10 = arith.constant 0 : index
    %c9 = arith.constant 9 : index
    %c0_11 = arith.constant 0 : index
    %13 = vector.load %arg1[%c0_10, %c9, %c0_11] : memref<1x48x4xbf16, #tpu.memory_space<vmem>>, vector<1x16x4xbf16>
    %14 = vector.shape_cast %13 : vector<1x16x4xbf16> to vector<16x4xbf16>
    %c2 = arith.constant 2 : index
    %c0_12 = arith.constant 0 : index
    %c0_13 = arith.constant 0 : index
    %15 = vector.load %arg2[%c2, %c0_12, %c0_13] : memref<19x4x40xbf16, #tpu.memory_space<vmem>>, vector<1x4x40xbf16>
    %16 = vector.shape_cast %15 : vector<1x4x40xbf16> to vector<4x40xbf16>
    %cst_14 = arith.constant dense<0.000000e+00> : vector<16x40xf32>
    %17 = tpu.matmul %14, %16, %cst_14 {dimension_numbers = #tpu.dot_dimension_numbers<[1], [0], [0], [1], [0, 0, 1, 1], [], []>} : vector<16x4xbf16>, vector<4x40xbf16>, vector<16x40xf32> -> vector<16x40xf32>
    %18 = arith.addf %12, %17 : vector<16x40xf32>
    %c0_15 = arith.constant 0 : index
    %c10 = arith.constant 10 : index
    %c0_16 = arith.constant 0 : index
    %19 = vector.load %arg1[%c0_15, %c10, %c0_16] : memref<1x48x4xbf16, #tpu.memory_space<vmem>>, vector<1x16x4xbf16>
    %20 = vector.shape_cast %19 : vector<1x16x4xbf16> to vector<16x4xbf16>
    %c3 = arith.constant 3 : index
    %c0_17 = arith.constant 0 : index
    %c0_18 = arith.constant 0 : index
    %21 = vector.load %arg2[%c3, %c0_17, %c0_18] : memref<19x4x40xbf16, #tpu.memory_space<vmem>>, vector<1x4x40xbf16>
    %22 = vector.shape_cast %21 : vector<1x4x40xbf16> to vector<4x40xbf16>
    %cst_19 = arith.constant dense<0.000000e+00> : vector<16x40xf32>
    %23 = tpu.matmul %20, %22, %cst_19 {dimension_numbers = #tpu.dot_dimension_numbers<[1], [0], [0], [1], [0, 0, 1, 1], [], []>} : vector<16x4xbf16>, vector<4x40xbf16>, vector<16x40xf32> -> vector<16x40xf32>
    %24 = arith.addf %18, %23 : vector<16x40xf32>
    %c0_20 = arith.constant 0 : index
    %c11 = arith.constant 11 : index
    %c0_21 = arith.constant 0 : index
    %25 = vector.load %arg1[%c0_20, %c11, %c0_21] : memref<1x48x4xbf16, #tpu.memory_space<vmem>>, vector<1x16x4xbf16>
    %26 = vector.shape_cast %25 : vector<1x16x4xbf16> to vector<16x4xbf16>
    %c4 = arith.constant 4 : index
    %c0_22 = arith.constant 0 : index
    %c0_23 = arith.constant 0 : index
    %27 = vector.load %arg2[%c4, %c0_22, %c0_23] : memref<19x4x40xbf16, #tpu.memory_space<vmem>>, vector<1x4x40xbf16>
    %28 = vector.shape_cast %27 : vector<1x4x40xbf16> to vector<4x40xbf16>
    %cst_24 = arith.constant dense<0.000000e+00> : vector<16x40xf32>
    %29 = tpu.matmul %26, %28, %cst_24 {dimension_numbers = #tpu.dot_dimension_numbers<[1], [0], [0], [1], [0, 0, 1, 1], [], []>} : vector<16x4xbf16>, vector<4x40xbf16>, vector<16x40xf32> -> vector<16x40xf32>
    %30 = arith.addf %24, %29 : vector<16x40xf32>
    %c0_25 = arith.constant 0 : index
    %c12 = arith.constant 12 : index
    %c0_26 = arith.constant 0 : index
    %31 = vector.load %arg1[%c0_25, %c12, %c0_26] : memref<1x48x4xbf16, #tpu.memory_space<vmem>>, vector<1x16x4xbf16>
    %32 = vector.shape_cast %31 : vector<1x16x4xbf16> to vector<16x4xbf16>
    %c5 = arith.constant 5 : index
    %c0_27 = arith.constant 0 : index
    %c0_28 = arith.constant 0 : index
    %33 = vector.load %arg2[%c5, %c0_27, %c0_28] : memref<19x4x40xbf16, #tpu.memory_space<vmem>>, vector<1x4x40xbf16>
    %34 = vector.shape_cast %33 : vector<1x4x40xbf16> to vector<4x40xbf16>
    %cst_29 = arith.constant dense<0.000000e+00> : vector<16x40xf32>
    %35 = tpu.matmul %32, %34, %cst_29 {dimension_numbers = #tpu.dot_dimension_numbers<[1], [0], [0], [1], [0, 0, 1, 1], [], []>} : vector<16x4xbf16>, vector<4x40xbf16>, vector<16x40xf32> -> vector<16x40xf32>
    %36 = arith.addf %30, %35 : vector<16x40xf32>
    %c0_30 = arith.constant 0 : index
    %c13 = arith.constant 13 : index
    %c0_31 = arith.constant 0 : index
    %37 = vector.load %arg1[%c0_30, %c13, %c0_31] : memref<1x48x4xbf16, #tpu.memory_space<vmem>>, vector<1x16x4xbf16>
    %38 = vector.shape_cast %37 : vector<1x16x4xbf16> to vector<16x4xbf16>
    %c6 = arith.constant 6 : index
    %c0_32 = arith.constant 0 : index
    %c0_33 = arith.constant 0 : index
    %39 = vector.load %arg2[%c6, %c0_32, %c0_33] : memref<19x4x40xbf16, #tpu.memory_space<vmem>>, vector<1x4x40xbf16>
    %40 = vector.shape_cast %39 : vector<1x4x40xbf16> to vector<4x40xbf16>
    %cst_34 = arith.constant dense<0.000000e+00> : vector<16x40xf32>
    %41 = tpu.matmul %38, %40, %cst_34 {dimension_numbers = #tpu.dot_dimension_numbers<[1], [0], [0], [1], [0, 0, 1, 1], [], []>} : vector<16x4xbf16>, vector<4x40xbf16>, vector<16x40xf32> -> vector<16x40xf32>
    %42 = arith.addf %36, %41 : vector<16x40xf32>
    %c0_35 = arith.constant 0 : index
    %c14 = arith.constant 14 : index
    %c0_36 = arith.constant 0 : index
    %43 = vector.load %arg1[%c0_35, %c14, %c0_36] : memref<1x48x4xbf16, #tpu.memory_space<vmem>>, vector<1x16x4xbf16>
    %44 = vector.shape_cast %43 : vector<1x16x4xbf16> to vector<16x4xbf16>
    %c7_37 = arith.constant 7 : index
    %c0_38 = arith.constant 0 : index
    %c0_39 = arith.constant 0 : index
    %45 = vector.load %arg2[%c7_37, %c0_38, %c0_39] : memref<19x4x40xbf16, #tpu.memory_space<vmem>>, vector<1x4x40xbf16>
    %46 = vector.shape_cast %45 : vector<1x4x40xbf16> to vector<4x40xbf16>
    %cst_40 = arith.constant dense<0.000000e+00> : vector<16x40xf32>
    %47 = tpu.matmul %44, %46, %cst_40 {dimension_numbers = #tpu.dot_dimension_numbers<[1], [0], [0], [1], [0, 0, 1, 1], [], []>} : vector<16x4xbf16>, vector<4x40xbf16>, vector<16x40xf32> -> vector<16x40xf32>
    %48 = arith.addf %42, %47 : vector<16x40xf32>
    %c0_41 = arith.constant 0 : index
    %c15 = arith.constant 15 : index
    %c0_42 = arith.constant 0 : index
    %49 = vector.load %arg1[%c0_41, %c15, %c0_42] : memref<1x48x4xbf16, #tpu.memory_space<vmem>>, vector<1x16x4xbf16>
    %50 = vector.shape_cast %49 : vector<1x16x4xbf16> to vector<16x4xbf16>
    %c8_43 = arith.constant 8 : index
    %c0_44 = arith.constant 0 : index
    %c0_45 = arith.constant 0 : index
    %51 = vector.load %arg2[%c8_43, %c0_44, %c0_45] : memref<19x4x40xbf16, #tpu.memory_space<vmem>>, vector<1x4x40xbf16>
    %52 = vector.shape_cast %51 : vector<1x4x40xbf16> to vector<4x40xbf16>
    %cst_46 = arith.constant dense<0.000000e+00> : vector<16x40xf32>
    %53 = tpu.matmul %50, %52, %cst_46 {dimension_numbers = #tpu.dot_dimension_numbers<[1], [0], [0], [1], [0, 0, 1, 1], [], []>} : vector<16x4xbf16>, vector<4x40xbf16>, vector<16x40xf32> -> vector<16x40xf32>
    %54 = arith.addf %48, %53 : vector<16x40xf32>
    %c0_47 = arith.constant 0 : index
    %c16 = arith.constant 16 : index
    %c0_48 = arith.constant 0 : index
    %55 = vector.load %arg1[%c0_47, %c16, %c0_48] : memref<1x48x4xbf16, #tpu.memory_space<vmem>>, vector<1x16x4xbf16>
    %56 = vector.shape_cast %55 : vector<1x16x4xbf16> to vector<16x4xbf16>
    %c9_49 = arith.constant 9 : index
    %c0_50 = arith.constant 0 : index
    %c0_51 = arith.constant 0 : index
    %57 = vector.load %arg2[%c9_49, %c0_50, %c0_51] : memref<19x4x40xbf16, #tpu.memory_space<vmem>>, vector<1x4x40xbf16>
    %58 = vector.shape_cast %57 : vector<1x4x40xbf16> to vector<4x40xbf16>
    %cst_52 = arith.constant dense<0.000000e+00> : vector<16x40xf32>
    %59 = tpu.matmul %56, %58, %cst_52 {dimension_numbers = #tpu.dot_dimension_numbers<[1], [0], [0], [1], [0, 0, 1, 1], [], []>} : vector<16x4xbf16>, vector<4x40xbf16>, vector<16x40xf32> -> vector<16x40xf32>
    %60 = arith.addf %54, %59 : vector<16x40xf32>
    %c0_53 = arith.constant 0 : index
    %c17 = arith.constant 17 : index
    %c0_54 = arith.constant 0 : index
    %61 = vector.load %arg1[%c0_53, %c17, %c0_54] : memref<1x48x4xbf16, #tpu.memory_space<vmem>>, vector<1x16x4xbf16>
    %62 = vector.shape_cast %61 : vector<1x16x4xbf16> to vector<16x4xbf16>
    %c10_55 = arith.constant 10 : index
    %c0_56 = arith.constant 0 : index
    %c0_57 = arith.constant 0 : index
    %63 = vector.load %arg2[%c10_55, %c0_56, %c0_57] : memref<19x4x40xbf16, #tpu.memory_space<vmem>>, vector<1x4x40xbf16>
    %64 = vector.shape_cast %63 : vector<1x4x40xbf16> to vector<4x40xbf16>
    %cst_58 = arith.constant dense<0.000000e+00> : vector<16x40xf32>
    %65 = tpu.matmul %62, %64, %cst_58 {dimension_numbers = #tpu.dot_dimension_numbers<[1], [0], [0], [1], [0, 0, 1, 1], [], []>} : vector<16x4xbf16>, vector<4x40xbf16>, vector<16x40xf32> -> vector<16x40xf32>
    %66 = arith.addf %60, %65 : vector<16x40xf32>
    %c0_59 = arith.constant 0 : index
    %c18 = arith.constant 18 : index
    %c0_60 = arith.constant 0 : index
    %67 = vector.load %arg1[%c0_59, %c18, %c0_60] : memref<1x48x4xbf16, #tpu.memory_space<vmem>>, vector<1x16x4xbf16>
    %68 = vector.shape_cast %67 : vector<1x16x4xbf16> to vector<16x4xbf16>
    %c11_61 = arith.constant 11 : index
    %c0_62 = arith.constant 0 : index
    %c0_63 = arith.constant 0 : index
    %69 = vector.load %arg2[%c11_61, %c0_62, %c0_63] : memref<19x4x40xbf16, #tpu.memory_space<vmem>>, vector<1x4x40xbf16>
    %70 = vector.shape_cast %69 : vector<1x4x40xbf16> to vector<4x40xbf16>
    %cst_64 = arith.constant dense<0.000000e+00> : vector<16x40xf32>
    %71 = tpu.matmul %68, %70, %cst_64 {dimension_numbers = #tpu.dot_dimension_numbers<[1], [0], [0], [1], [0, 0, 1, 1], [], []>} : vector<16x4xbf16>, vector<4x40xbf16>, vector<16x40xf32> -> vector<16x40xf32>
    %72 = arith.addf %66, %71 : vector<16x40xf32>
    %c0_65 = arith.constant 0 : index
    %c19 = arith.constant 19 : index
    %c0_66 = arith.constant 0 : index
    %73 = vector.load %arg1[%c0_65, %c19, %c0_66] : memref<1x48x4xbf16, #tpu.memory_space<vmem>>, vector<1x16x4xbf16>
    %74 = vector.shape_cast %73 : vector<1x16x4xbf16> to vector<16x4xbf16>
    %c12_67 = arith.constant 12 : index
    %c0_68 = arith.constant 0 : index
    %c0_69 = arith.constant 0 : index
    %75 = vector.load %arg2[%c12_67, %c0_68, %c0_69] : memref<19x4x40xbf16, #tpu.memory_space<vmem>>, vector<1x4x40xbf16>
    %76 = vector.shape_cast %75 : vector<1x4x40xbf16> to vector<4x40xbf16>
    %cst_70 = arith.constant dense<0.000000e+00> : vector<16x40xf32>
    %77 = tpu.matmul %74, %76, %cst_70 {dimension_numbers = #tpu.dot_dimension_numbers<[1], [0], [0], [1], [0, 0, 1, 1], [], []>} : vector<16x4xbf16>, vector<4x40xbf16>, vector<16x40xf32> -> vector<16x40xf32>
    %78 = arith.addf %72, %77 : vector<16x40xf32>
    %c0_71 = arith.constant 0 : index
    %c20 = arith.constant 20 : index
    %c0_72 = arith.constant 0 : index
    %79 = vector.load %arg1[%c0_71, %c20, %c0_72] : memref<1x48x4xbf16, #tpu.memory_space<vmem>>, vector<1x16x4xbf16>
    %80 = vector.shape_cast %79 : vector<1x16x4xbf16> to vector<16x4xbf16>
    %c13_73 = arith.constant 13 : index
    %c0_74 = arith.constant 0 : index
    %c0_75 = arith.constant 0 : index
    %81 = vector.load %arg2[%c13_73, %c0_74, %c0_75] : memref<19x4x40xbf16, #tpu.memory_space<vmem>>, vector<1x4x40xbf16>
    %82 = vector.shape_cast %81 : vector<1x4x40xbf16> to vector<4x40xbf16>
    %cst_76 = arith.constant dense<0.000000e+00> : vector<16x40xf32>
    %83 = tpu.matmul %80, %82, %cst_76 {dimension_numbers = #tpu.dot_dimension_numbers<[1], [0], [0], [1], [0, 0, 1, 1], [], []>} : vector<16x4xbf16>, vector<4x40xbf16>, vector<16x40xf32> -> vector<16x40xf32>
    %84 = arith.addf %78, %83 : vector<16x40xf32>
    %c0_77 = arith.constant 0 : index
    %c21 = arith.constant 21 : index
    %c0_78 = arith.constant 0 : index
    %85 = vector.load %arg1[%c0_77, %c21, %c0_78] : memref<1x48x4xbf16, #tpu.memory_space<vmem>>, vector<1x16x4xbf16>
    %86 = vector.shape_cast %85 : vector<1x16x4xbf16> to vector<16x4xbf16>
    %c14_79 = arith.constant 14 : index
    %c0_80 = arith.constant 0 : index
    %c0_81 = arith.constant 0 : index
    %87 = vector.load %arg2[%c14_79, %c0_80, %c0_81] : memref<19x4x40xbf16, #tpu.memory_space<vmem>>, vector<1x4x40xbf16>
    %88 = vector.shape_cast %87 : vector<1x4x40xbf16> to vector<4x40xbf16>
    %cst_82 = arith.constant dense<0.000000e+00> : vector<16x40xf32>
    %89 = tpu.matmul %86, %88, %cst_82 {dimension_numbers = #tpu.dot_dimension_numbers<[1], [0], [0], [1], [0, 0, 1, 1], [], []>} : vector<16x4xbf16>, vector<4x40xbf16>, vector<16x40xf32> -> vector<16x40xf32>
    %90 = arith.addf %84, %89 : vector<16x40xf32>
    %c0_83 = arith.constant 0 : index
    %c22 = arith.constant 22 : index
    %c0_84 = arith.constant 0 : index
    %91 = vector.load %arg1[%c0_83, %c22, %c0_84] : memref<1x48x4xbf16, #tpu.memory_space<vmem>>, vector<1x16x4xbf16>
    %92 = vector.shape_cast %91 : vector<1x16x4xbf16> to vector<16x4xbf16>
    %c15_85 = arith.constant 15 : index
    %c0_86 = arith.constant 0 : index
    %c0_87 = arith.constant 0 : index
    %93 = vector.load %arg2[%c15_85, %c0_86, %c0_87] : memref<19x4x40xbf16, #tpu.memory_space<vmem>>, vector<1x4x40xbf16>
    %94 = vector.shape_cast %93 : vector<1x4x40xbf16> to vector<4x40xbf16>
    %cst_88 = arith.constant dense<0.000000e+00> : vector<16x40xf32>
    %95 = tpu.matmul %92, %94, %cst_88 {dimension_numbers = #tpu.dot_dimension_numbers<[1], [0], [0], [1], [0, 0, 1, 1], [], []>} : vector<16x4xbf16>, vector<4x40xbf16>, vector<16x40xf32> -> vector<16x40xf32>
    %96 = arith.addf %90, %95 : vector<16x40xf32>
    %c0_89 = arith.constant 0 : index
    %c23 = arith.constant 23 : index
    %c0_90 = arith.constant 0 : index
    %97 = vector.load %arg1[%c0_89, %c23, %c0_90] : memref<1x48x4xbf16, #tpu.memory_space<vmem>>, vector<1x16x4xbf16>
    %98 = vector.shape_cast %97 : vector<1x16x4xbf16> to vector<16x4xbf16>
    %c16_91 = arith.constant 16 : index
    %c0_92 = arith.constant 0 : index
    %c0_93 = arith.constant 0 : index
    %99 = vector.load %arg2[%c16_91, %c0_92, %c0_93] : memref<19x4x40xbf16, #tpu.memory_space<vmem>>, vector<1x4x40xbf16>
    %100 = vector.shape_cast %99 : vector<1x4x40xbf16> to vector<4x40xbf16>
    %cst_94 = arith.constant dense<0.000000e+00> : vector<16x40xf32>
    %101 = tpu.matmul %98, %100, %cst_94 {dimension_numbers = #tpu.dot_dimension_numbers<[1], [0], [0], [1], [0, 0, 1, 1], [], []>} : vector<16x4xbf16>, vector<4x40xbf16>, vector<16x40xf32> -> vector<16x40xf32>
    %102 = arith.addf %96, %101 : vector<16x40xf32>
    %c0_95 = arith.constant 0 : index
    %c24 = arith.constant 24 : index
    %c0_96 = arith.constant 0 : index
    %103 = vector.load %arg1[%c0_95, %c24, %c0_96] : memref<1x48x4xbf16, #tpu.memory_space<vmem>>, vector<1x16x4xbf16>
    %104 = vector.shape_cast %103 : vector<1x16x4xbf16> to vector<16x4xbf16>
    %c17_97 = arith.constant 17 : index
    %c0_98 = arith.constant 0 : index
    %c0_99 = arith.constant 0 : index
    %105 = vector.load %arg2[%c17_97, %c0_98, %c0_99] : memref<19x4x40xbf16, #tpu.memory_space<vmem>>, vector<1x4x40xbf16>
    %106 = vector.shape_cast %105 : vector<1x4x40xbf16> to vector<4x40xbf16>
    %cst_100 = arith.constant dense<0.000000e+00> : vector<16x40xf32>
    %107 = tpu.matmul %104, %106, %cst_100 {dimension_numbers = #tpu.dot_dimension_numbers<[1], [0], [0], [1], [0, 0, 1, 1], [], []>} : vector<16x4xbf16>, vector<4x40xbf16>, vector<16x40xf32> -> vector<16x40xf32>
    %108 = arith.addf %102, %107 : vector<16x40xf32>
    %c0_101 = arith.constant 0 : index
    %c25 = arith.constant 25 : index
    %c0_102 = arith.constant 0 : index
    %109 = vector.load %arg1[%c0_101, %c25, %c0_102] : memref<1x48x4xbf16, #tpu.memory_space<vmem>>, vector<1x16x4xbf16>
    %110 = vector.shape_cast %109 : vector<1x16x4xbf16> to vector<16x4xbf16>
    %c18_103 = arith.constant 18 : index
    %c0_104 = arith.constant 0 : index
    %c0_105 = arith.constant 0 : index
    %111 = vector.load %arg2[%c18_103, %c0_104, %c0_105] : memref<19x4x40xbf16, #tpu.memory_space<vmem>>, vector<1x4x40xbf16>
    %112 = vector.shape_cast %111 : vector<1x4x40xbf16> to vector<4x40xbf16>
    %cst_106 = arith.constant dense<0.000000e+00> : vector<16x40xf32>
    %113 = tpu.matmul %110, %112, %cst_106 {dimension_numbers = #tpu.dot_dimension_numbers<[1], [0], [0], [1], [0, 0, 1, 1], [], []>} : vector<16x4xbf16>, vector<4x40xbf16>, vector<16x40xf32> -> vector<16x40xf32>
    %114 = arith.addf %108, %113 : vector<16x40xf32>
    %c0_107 = arith.constant 0 : index
    %c0_108 = arith.constant 0 : index
    %115 = vector.load %arg3[%c0_107, %c0_108] : memref<1x40xf32, #tpu.memory_space<vmem>>, vector<1x40xf32>
    %116 = vector.broadcast %115 : vector<1x40xf32> to vector<16x40xf32>
    %117 = arith.addf %114, %116 : vector<16x40xf32>
    %118 = arith.negf %117 : vector<16x40xf32>
    %119 = math.exp %118 : vector<16x40xf32>
    %cst_109 = arith.constant 1.000000e+00 : f32
    %120 = vector.broadcast %cst_109 : f32 to vector<16x40xf32>
    %121 = arith.addf %120, %119 : vector<16x40xf32>
    %122 = arith.divf %120, %121 : vector<16x40xf32>
    %123 = arith.mulf %117, %122 : vector<16x40xf32>
    %c0_110 = arith.constant 0 : index
    %c16_111 = arith.constant 16 : index
    %c0_112 = arith.constant 0 : index
    %124 = vector.load %arg1[%c0_110, %c16_111, %c0_112] : memref<1x48x4xbf16, #tpu.memory_space<vmem>>, vector<1x16x4xbf16>
    %125 = vector.shape_cast %124 : vector<1x16x4xbf16> to vector<16x4xbf16>
    %126 = arith.truncf %123 : vector<16x40xf32> to vector<16x40xbf16>
    %c0_113 = arith.constant 0 : index
    %c0_114 = arith.constant 0 : index
    %127 = vector.load %arg4[%c0_113, %c0_114] : memref<40x8xbf16, #tpu.memory_space<vmem>>, vector<40x8xbf16>
    %cst_115 = arith.constant dense<0.000000e+00> : vector<16x8xf32>
    %128 = tpu.matmul %126, %127, %cst_115 {dimension_numbers = #tpu.dot_dimension_numbers<[1], [0], [0], [1], [0, 0, 1, 1], [], []>} : vector<16x40xbf16>, vector<40x8xbf16>, vector<16x8xf32> -> vector<16x8xf32>
    %c0_116 = arith.constant 0 : index
    %c0_117 = arith.constant 0 : index
    %129 = vector.load %arg5[%c0_116, %c0_117] : memref<4x8xbf16, #tpu.memory_space<vmem>>, vector<4x8xbf16>
    %cst_118 = arith.constant dense<0.000000e+00> : vector<16x8xf32>
    %130 = tpu.matmul %125, %129, %cst_118 {dimension_numbers = #tpu.dot_dimension_numbers<[1], [0], [0], [1], [0, 0, 1, 1], [], []>} : vector<16x4xbf16>, vector<4x8xbf16>, vector<16x8xf32> -> vector<16x8xf32>
    %131 = arith.addf %128, %130 : vector<16x8xf32>
    %c0_119 = arith.constant 0 : index
    %c0_120 = arith.constant 0 : index
    %132 = vector.load %arg6[%c0_119, %c0_120] : memref<1x8xf32, #tpu.memory_space<vmem>>, vector<1x8xf32>
    %133 = vector.broadcast %132 : vector<1x8xf32> to vector<16x8xf32>
    %134 = arith.addf %131, %133 : vector<16x8xf32>
    %135 = arith.negf %134 : vector<16x8xf32>
    %136 = math.exp %135 : vector<16x8xf32>
    %cst_121 = arith.constant 1.000000e+00 : f32
    %137 = vector.broadcast %cst_121 : f32 to vector<16x8xf32>
    %138 = arith.addf %137, %136 : vector<16x8xf32>
    %139 = arith.divf %137, %138 : vector<16x8xf32>
    %140 = arith.mulf %134, %139 : vector<16x8xf32>
    %c0_122 = arith.constant 0 : index
    %c0_123 = arith.constant 0 : index
    %141 = vector.load %arg8[%c0_122, %c0_123] : memref<16x8xf32, #tpu.memory_space<vmem>>, vector<16x8xf32>
    tpu.vector_store %arg8[%c0_122, %c0_123], %140 {strides = array<i32>} : memref<16x8xf32, #tpu.memory_space<vmem>>, vector<16x8xf32>,
    %c0_124 = arith.constant 0 : index
    %c0_125 = arith.constant 0 : index
    %142 = tpu.strided_load %arg8[%c0_124, %c0_125] {strides = array<i32: 2, 1>} : memref<16x8xf32, #tpu.memory_space<vmem>>, vector<8x8xf32>
    %c1_126 = arith.constant 1 : index
    %c0_127 = arith.constant 0 : index
    %143 = tpu.strided_load %arg8[%c1_126, %c0_127] {strides = array<i32: 2, 1>} : memref<16x8xf32, #tpu.memory_space<vmem>>, vector<8x8xf32>
    %144 = arith.maximumf %142, %143 : vector<8x8xf32>
    %c0_128 = arith.constant 0 : index
    %c0_129 = arith.constant 0 : index
    %c0_130 = arith.constant 0 : index
    %145 = vector.load %arg7[%c0_128, %c0_129, %c0_130] : memref<1x8x8xf32, #tpu.memory_space<vmem>>, vector<1x8x8xf32>
    %146 = vector.shape_cast %145 : vector<1x8x8xf32> to vector<8x8xf32>
    %147 = vector.shape_cast %144 : vector<8x8xf32> to vector<1x8x8xf32>
    tpu.vector_store %arg7[%c0_128, %c0_129, %c0_130], %147 {strides = array<i32>} : memref<1x8x8xf32, #tpu.memory_space<vmem>>, vector<1x8x8xf32>,
    return
  }
  func.func @transform_0(%arg0: i32) -> (i32, i32, i32) {
    %c0_i32 = arith.constant 0 : i32
    %c0_i32_0 = arith.constant 0 : i32
    %c0_i32_1 = arith.constant 0 : i32
    return %arg0, %c0_i32, %c0_i32_0 : i32, i32, i32
  }
  func.func @transform_1(%arg0: i32) -> (i32, i32, i32) {
    %c0_i32 = arith.constant 0 : i32
    %c0_i32_0 = arith.constant 0 : i32
    %c0_i32_1 = arith.constant 0 : i32
    %c0_i32_2 = arith.constant 0 : i32
    return %c0_i32, %c0_i32_0, %c0_i32_1 : i32, i32, i32
  }
  func.func @transform_2(%arg0: i32) -> (i32, i32) {
    %c0_i32 = arith.constant 0 : i32
    %c0_i32_0 = arith.constant 0 : i32
    %c0_i32_1 = arith.constant 0 : i32
    return %c0_i32, %c0_i32_0 : i32, i32
  }
  func.func @transform_3(%arg0: i32) -> (i32, i32) {
    %c0_i32 = arith.constant 0 : i32
    %c0_i32_0 = arith.constant 0 : i32
    %c0_i32_1 = arith.constant 0 : i32
    return %c0_i32, %c0_i32_0 : i32, i32
  }
  func.func @transform_4(%arg0: i32) -> (i32, i32) {
    %c0_i32 = arith.constant 0 : i32
    %c0_i32_0 = arith.constant 0 : i32
    %c0_i32_1 = arith.constant 0 : i32
    return %c0_i32, %c0_i32_0 : i32, i32
  }
  func.func @transform_5(%arg0: i32) -> (i32, i32) {
    %c0_i32 = arith.constant 0 : i32
    %c0_i32_0 = arith.constant 0 : i32
    %c0_i32_1 = arith.constant 0 : i32
    return %c0_i32, %c0_i32_0 : i32, i32
  }
  func.func @transform_6(%arg0: i32) -> (i32, i32, i32) {
    %c0_i32 = arith.constant 0 : i32
    %c0_i32_0 = arith.constant 0 : i32
    %c0_i32_1 = arith.constant 0 : i32
    return %arg0, %c0_i32, %c0_i32_0 : i32, i32, i32
  }
}

</mosaic_0001>

<llo_original>
// kernel: tpu_custom_call.1
$region0: #{tpu_custom_call.1}
  #allocation0 [shape = 'u32[]', space=smem, size = 0x4, offset = 0x4, fixed_abs, tag = 'smem constant byte address 0x4 - core index']
  #allocation1 [shape = 'u32[72,128]{1,0:T(1,128)}', space=vmem, size = 0x9000, scoped, tag = 'internal scratch']
  #allocation2 [shape = 'f32[16,8]{1,0:T(8,128)}', space=vmem, size = 0x2000, scoped, tag = 'scratch operand']
  %s0 = inlined_call_operand.vmem [shape: bf16[2,48,4], index: 0, kind: input, shape index: {}]
  %s1 = inlined_call_operand.vmem [shape: bf16[19,4,40], index: 1, kind: input, shape index: {}]
  %s2 = inlined_call_operand.vmem [shape: f32[1,40], index: 2, kind: input, shape index: {}]
  %s3 = inlined_call_operand.vmem [shape: bf16[40,8], index: 3, kind: input, shape index: {}]
  %s4 = inlined_call_operand.vmem [shape: bf16[4,8], index: 4, kind: input, shape index: {}]
  %s5 = inlined_call_operand.vmem [shape: f32[1,8], index: 5, kind: input, shape index: {}]
  %s6 = inlined_call_operand.hbm [shape: f32[2,8,8], index: 6, kind: output, shape index: {}]
  %s7 = sld [smem:[#allocation0]]
  $region57: #{tpu_custom_call.1} parent=0
    _
  %s9 = ssub.s32 1, %s7
  %s10 = scalar_select 0, %s9, %s7
  $region1: #{tpu_custom_call.1} parent=0
    #allocation3 [shape = 'u8[8192]{0}', space=vmem, size = 0x2000, scoped, tag = 'output window, operand 0']
    #allocation4 [shape = 's32[2]{0}', space=sflag, size = 0x8, scoped, tag = 'scoped memory for tpu_custom_call.1']
    %11 = vsyncpa [#allocation4], 0
    %s12 = scalar_lea.sflag [#allocation4], 1
    %13 = vsyncpa %s12, 0
    loop: start=0, step=1, limit=4
    $region2: #{tpu_custom_call.1} parent=1 // loop_pre_header
      _
    $region3: #{tpu_custom_call.1} parent=1 // loop_header
      %s15 = sphi 0, %s19
      %p16 = scmp.ge.s32.totalorder %s15, 4
      %s25 = sphi 0, %s27
      %s28 = sphi 0, %s25
      %s29 = sphi 0, %s28
      %s45 = sphi 0, %s29
      %s49 = sphi 0, %s49
      %s51 = sphi 0, %s49
      %s52 = sphi 0, %s51
      %s66 = sphi 0, %s52
      %s70 = sphi 0, %s70
      %s72 = sphi 0, %s70
      %s73 = sphi 0, %s72
      %s87 = sphi 0, %s73
      %s91 = sphi 0, %s91
      %s93 = sphi 0, %s91
      %s94 = sphi 0, %s93
      %s108 = sphi 0, %s94
      %s112 = sphi 0, %s112
      %s114 = sphi 0, %s112
      %s115 = sphi 0, %s114
      %s129 = sphi 0, %s115
      %s133 = sphi 0, %s133
      %s135 = sphi 0, %s133
      %s136 = sphi 0, %s135
      %s150 = sphi 0, %s136
      %s156 = sphi 0, %s158
      %s159 = sphi 0, %s156
      %s160 = sphi 0, %s159
      %s176 = sphi 0, %s160
    $region4: #{tpu_custom_call.1} parent=1 // loop_header_branch
      %18 = sbr.rel (%p16) target = $region8
    $region5: #{tpu_custom_call.1} parent=1 // loop_body
      %s20 = ssub.s32 %s15, 1
      %s21 = ssub.s32 %s15, 2
      %s22 = sadd.s32 %s15, 1
      %s23 = ssub.s32 %s15, %s22
      %p24 = scmp.eq.s32.totalorder %s23, 0
      %s26 = sadd.s32 %s25, 1
      %s27 = scalar_select %p24, %s25, %s26
      %p30 = pneg %p24
      %p31 = scmp.eq.s32.totalorder %s15, 1
      %p32 = por %p30, %p31
      %p33 = scmp.ne.s32.totalorder %s25, %s28
      %p34 = scmp.eq.s32.totalorder %s15, 0
      %p35 = por %p33, %p34
      %p36 = scmp.ne.s32.totalorder %s25, %s28
      %p37 = scmp.eq.s32.totalorder %s20, 1
      %p38 = por %p36, %p37
      %p39 = scmp.ne.s32.totalorder %s28, %s29
      %p40 = scmp.eq.s32.totalorder %s20, 0
      %p41 = por %p39, %p40
      %p42 = scmp.ne.s32.totalorder %s28, %s29
      %p43 = scmp.eq.s32.totalorder %s21, 1
      %p44 = por %p42, %p43
      %p46 = scmp.ne.s32.totalorder %s29, %s45
      %p47 = scmp.eq.s32.totalorder %s21, 0
      %p48 = por %p46, %p47
      %s50 = sadd.s32 %s49, 1
      %p53 = scmp.eq.s32.totalorder %s15, 1
      %p54 = scmp.ne.s32.totalorder %s49, %s51
      %p55 = scmp.eq.s32.totalorder %s15, 0
      %p56 = por %p54, %p55
      %p57 = scmp.ne.s32.totalorder %s49, %s51
      %p58 = scmp.eq.s32.totalorder %s20, 1
      %p59 = por %p57, %p58
      %p60 = scmp.ne.s32.totalorder %s51, %s52
      %p61 = scmp.eq.s32.totalorder %s20, 0
      %p62 = por %p60, %p61
      %p63 = scmp.ne.s32.totalorder %s51, %s52
      %p64 = scmp.eq.s32.totalorder %s21, 1
      %p65 = por %p63, %p64
      %p67 = scmp.ne.s32.totalorder %s52, %s66
      %p68 = scmp.eq.s32.totalorder %s21, 0
      %p69 = por %p67, %p68
      %s71 = sadd.s32 %s70, 1
      %p74 = scmp.eq.s32.totalorder %s15, 1
      %p75 = scmp.ne.s32.totalorder %s70, %s72
      %p76 = scmp.eq.s32.totalorder %s15, 0
      %p77 = por %p75, %p76
      %p78 = scmp.ne.s32.totalorder %s70, %s72
      %p79 = scmp.eq.s32.totalorder %s20, 1
      %p80 = por %p78, %p79
      %p81 = scmp.ne.s32.totalorder %s72, %s73
      %p82 = scmp.eq.s32.totalorder %s20, 0
      %p83 = por %p81, %p82
      %p84 = scmp.ne.s32.totalorder %s72, %s73
      %p85 = scmp.eq.s32.totalorder %s21, 1
      %p86 = por %p84, %p85
      %p88 = scmp.ne.s32.totalorder %s73, %s87
      %p89 = scmp.eq.s32.totalorder %s21, 0
      %p90 = por %p88, %p89
      %s92 = sadd.s32 %s91, 1
      %p95 = scmp.eq.s32.totalorder %s15, 1
      %p96 = scmp.ne.s32.totalorder %s91, %s93
      %p97 = scmp.eq.s32.totalorder %s15, 0
      %p98 = por %p96, %p97
      %p99 = scmp.ne.s32.totalorder %s91, %s93
      %p100 = scmp.eq.s32.totalorder %s20, 1
      %p101 = por %p99, %p100
      %p102 = scmp.ne.s32.totalorder %s93, %s94
      %p103 = scmp.eq.s32.totalorder %s20, 0
      %p104 = por %p102, %p103
      %p105 = scmp.ne.s32.totalorder %s93, %s94
      %p106 = scmp.eq.s32.totalorder %s21, 1
      %p107 = por %p105, %p106
      %p109 = scmp.ne.s32.totalorder %s94, %s108
      %p110 = scmp.eq.s32.totalorder %s21, 0
      %p111 = por %p109, %p110
      %s113 = sadd.s32 %s112, 1
      %p116 = scmp.eq.s32.totalorder %s15, 1
      %p117 = scmp.ne.s32.totalorder %s112, %s114
      %p118 = scmp.eq.s32.totalorder %s15, 0
      %p119 = por %p117, %p118
      %p120 = scmp.ne.s32.totalorder %s112, %s114
      %p121 = scmp.eq.s32.totalorder %s20, 1
      %p122 = por %p120, %p121
      %p123 = scmp.ne.s32.totalorder %s114, %s115
      %p124 = scmp.eq.s32.totalorder %s20, 0
      %p125 = por %p123, %p124
      %p126 = scmp.ne.s32.totalorder %s114, %s115
      %p127 = scmp.eq.s32.totalorder %s21, 1
      %p128 = por %p126, %p127
      %p130 = scmp.ne.s32.totalorder %s115, %s129
      %p131 = scmp.eq.s32.totalorder %s21, 0
      %p132 = por %p130, %p131
      %s134 = sadd.s32 %s133, 1
      %p137 = scmp.eq.s32.totalorder %s15, 1
      %p138 = scmp.ne.s32.totalorder %s133, %s135
      %p139 = scmp.eq.s32.totalorder %s15, 0
      %p140 = por %p138, %p139
      %p141 = scmp.ne.s32.totalorder %s133, %s135
      %p142 = scmp.eq.s32.totalorder %s20, 1
      %p143 = por %p141, %p142
      %p144 = scmp.ne.s32.totalorder %s135, %s136
      %p145 = scmp.eq.s32.totalorder %s20, 0
      %p146 = por %p144, %p145
      %p147 = scmp.ne.s32.totalorder %s135, %s136
      %p148 = scmp.eq.s32.totalorder %s21, 1
      %p149 = por %p147, %p148
      %p151 = scmp.ne.s32.totalorder %s136, %s150
      %p152 = scmp.eq.s32.totalorder %s21, 0
      %p153 = por %p151, %p152
      %s154 = ssub.s32 %s15, %s22
      %p155 = scmp.eq.s32.totalorder %s154, 0
      %s157 = sadd.s32 %s156, 1
      %s158 = scalar_select %p155, %s156, %s157
      %p161 = pneg %p155
      %p162 = scmp.eq.s32.totalorder %s15, 1
      %p163 = por %p161, %p162
      %p164 = scmp.ne.s32.totalorder %s156, %s159
      %p165 = scmp.eq.s32.totalorder %s15, 0
      %p166 = por %p164, %p165
      %p167 = scmp.ne.s32.totalorder %s156, %s159
      %p168 = scmp.eq.s32.totalorder %s20, 1
      %p169 = por %p167, %p168
      %p170 = scmp.ne.s32.totalorder %s159, %s160
      %p171 = scmp.eq.s32.totalorder %s20, 0
      %p172 = por %p170, %p171
      %p173 = scmp.ne.s32.totalorder %s159, %s160
      %p174 = scmp.eq.s32.totalorder %s21, 1
      %p175 = por %p173, %p174
      %p177 = scmp.ne.s32.totalorder %s160, %s176
      %p178 = scmp.eq.s32.totalorder %s21, 0
      %p179 = por %p177, %p178
      %p180 = scmp.le.s32.totalorder 1, %s15
      %p181 = scmp.lt.s32.totalorder %s15, 3
      %p182 = pnand %p180, %p181
      %p183 = pneg %p182
      // Predicated region
      $region9: #{tpu_custom_call.1} parent=5 // pred_check
        _
      $region10: #{tpu_custom_call.1} parent=5 // pred_check_branch
        %185 = sbr.rel (%p182) target = $region12
      $region11: #{tpu_custom_call.1} parent=5 // pred_region
        %s186 = ssub.s32 %s15, 1
        // Predicated region
        $region13: #{tpu_custom_call.1} parent=11 // pred_check
          %p187 = pneg %p62
        $region14: #{tpu_custom_call.1} parent=11 // pred_check_branch
          %189 = sbr.rel (%p187) target = $region16
        $region15: #{tpu_custom_call.1} parent=11 // pred_region
          _
        $region16: #{tpu_custom_call.1} parent=11 // pred_fallthru
          _
        // Predicated region
        $region17: #{tpu_custom_call.1} parent=11 // pred_check
          %p190 = pneg %p83
        $region18: #{tpu_custom_call.1} parent=11 // pred_check_branch
          %192 = sbr.rel (%p190) target = $region20
        $region19: #{tpu_custom_call.1} parent=11 // pred_region
          _
        $region20: #{tpu_custom_call.1} parent=11 // pred_fallthru
          _
        // Predicated region
        $region21: #{tpu_custom_call.1} parent=11 // pred_check
          %p193 = pneg %p104
        $region22: #{tpu_custom_call.1} parent=11 // pred_check_branch
          %195 = sbr.rel (%p193) target = $region24
        $region23: #{tpu_custom_call.1} parent=11 // pred_region
          _
        $region24: #{tpu_custom_call.1} parent=11 // pred_fallthru
          _
        // Predicated region
        $region25: #{tpu_custom_call.1} parent=11 // pred_check
          %p196 = pneg %p125
        $region26: #{tpu_custom_call.1} parent=11 // pred_check_branch
          %198 = sbr.rel (%p196) target = $region28
        $region27: #{tpu_custom_call.1} parent=11 // pred_region
          _
        $region28: #{tpu_custom_call.1} parent=11 // pred_fallthru
          _
        // Predicated region
        $region29: #{tpu_custom_call.1} parent=11 // pred_check
          %p199 = pneg %p146
        $region30: #{tpu_custom_call.1} parent=11 // pred_check_branch
          %201 = sbr.rel (%p199) target = $region32
        $region31: #{tpu_custom_call.1} parent=11 // pred_region
          _
        $region32: #{tpu_custom_call.1} parent=11 // pred_fallthru
          _
      $region12: #{tpu_custom_call.1} parent=5 // pred_fallthru
        _
      %p202 = scmp.lt.s32.totalorder %s15, 2
      // Predicated region
      $region33: #{tpu_custom_call.1} parent=5 // pred_check
        %p203 = pneg %p202
      $region34: #{tpu_custom_call.1} parent=5 // pred_check_branch
        %205 = sbr.rel (%p203) target = $region36
      $region35: #{tpu_custom_call.1} parent=5 // pred_region
        // Predicated region
        $region37: #{tpu_custom_call.1} parent=35 // pred_check
          %p206 = pneg %p35
        $region38: #{tpu_custom_call.1} parent=35 // pred_check_branch
          %208 = sbr.rel (%p206) target = $region40
        $region39: #{tpu_custom_call.1} parent=35 // pred_region
          %p209 = scmp.lt.s32.totalorder %s15, 1
          %s210 = scalar_select %p209, %s15, 1
          %s211 = smul.addr %s210, 6
          %s212 = smul.addr %s211, 4
          %s213 = scalar_lea.vmem %s0, %s212
        $region40: #{tpu_custom_call.1} parent=35 // pred_fallthru
          _
      $region36: #{tpu_custom_call.1} parent=5 // pred_fallthru
        _
      %p214 = scmp.le.s32.totalorder 1, %s15
      %p215 = scmp.lt.s32.totalorder %s15, 3
      %p216 = pnand %p214, %p215
      %p217 = pneg %p216
      // Predicated region
      $region41: #{tpu_custom_call.1} parent=5 // pred_check
        _
      $region42: #{tpu_custom_call.1} parent=5 // pred_check_branch
        %219 = sbr.rel (%p216) target = $region44
      $region43: #{tpu_custom_call.1} parent=5 // pred_region
        %s220 = ssub.s32 %s15, 1
        %p221 = scmp.lt.s32.totalorder %s20, 1
        %s222 = scalar_select %p221, %s20, 1
        %s223 = smul.addr %s222, 6
        %s224 = smul.addr %s223, 4
        %s225 = scalar_lea.vmem %s0, %s224
        %p226 = pneg %p41
        %p227 = pneg %p38
        %p228 = pneg %p62
        %p229 = pneg %p59
        %p230 = pneg %p83
        %p231 = pneg %p80
        %p232 = pneg %p104
        %p233 = pneg %p101
        %p234 = pneg %p125
        %p235 = pneg %p122
        %p236 = pneg %p146
        %p237 = pneg %p143
        %p238 = pneg %p172
        %p239 = pneg %p169
        %s240 = sand.u32 %s159, 1
        %s241 = scalar_lea.sflag [#allocation4], %s240
        %s242 = sand.u32 %s159, 1
        %s243 = smul.addr %s242, 8
        %s244 = scalar_lea.vmem [#allocation3], %s243
        %p245 = scmp.lt.s32.totalorder %s20, 1
        %s246 = scalar_select %p245, %s20, 1
        %s247 = smul.addr %s246, 6
        %s248 = smul.addr %s247, 4
        %s249 = scalar_lea.vmem %s0, %s248
        %v251 = vld [vmem:[%s249] sm:$0x8]
        %v252 = vld [vmem:[%s249 + $0x4] sm:$0xf]
        %v253 = vld [vmem:[%s249 + $0x8] sm:$0xf]
        %v254 = vld [vmem:[%s1] sm:$0x3]
        %s255 = scalar_lea.vmem %s1, 2
        %v256 = vld [vmem:[%s255] sm:$0x3]
        %v259 = vunpack.c.l.b16 %v252
        %v260 = vunpack.c.l.b16 %v253
        %v261 = vpack.c.b16 %v260, %v259
        %vm262 = vcmask 31744
        %v264 = vsel %vm262, %v261, 0
        %vm266 = vcmask 1041408
        %v268 = vsel %vm266, %v256, 0
        %270 = vmatpush.bf16.msra.mxu0 0
        %271 = vmatpush.bf16.msra.mxu0 0
        %272 = vmatpush.bf16.msra.mxu0 0
        %273 = vmatpush.bf16.msra.mxu0 0
        %274 = vmatpush.bf16.msra.mxu0 0
        %275 = vmatpush.bf16.msra.mxu0 0
        %276 = vmatpush.bf16.msra.mxu0 0
        %277 = vmatpush.bf16.msra.mxu0 %v268
        %278 = vmatmul.bf16.gmra.mxu0 %v264
        %v279 = vpop.f32.mrf.mxu0
        %v280 = vadd.f32 0.0, %v279
        %v281 = vpop.f32.mrf.mxu0
        %v282 = vadd.f32 0.0, %v281
        %283 = vdwg.mxu0
        %v285 = vunpack.c.l.b16 %v251
        %v286 = vpack.c.b16 %v259, %v285
        %v287 = vpack.c.b16 %v260, %v260
        %vm288 = vsmask.f32 4352
        %v290 = vshrl.u32 %v286, 16
        %v292 = vrot.slane %v290, 3
        %v293 = vshll.u32 %v286, 16
        %v295 = vrot.slane %v293, 4
        %v296 = vor.u32 %v292, %v295
        %v298 = vshrl.u32 %v287, 16
        %v300 = vrot.slane %v298, 3
        %v301 = vshll.u32 %v287, 16
        %v303 = vrot.slane %v301, 4
        %v304 = vor.u32 %v300, %v303
        %v305 = vsel %vm288, %v296, %v304
        %v307 = vsel %vm262, %v305, 0
        %v310 = vsel %vm266, %v254, 0
        %312 = vmatpush.bf16.msra.mxu0 0
        %313 = vmatpush.bf16.msra.mxu0 0
        %314 = vmatpush.bf16.msra.mxu0 0
        %315 = vmatpush.bf16.msra.mxu0 0
        %316 = vmatpush.bf16.msra.mxu0 0
        %317 = vmatpush.bf16.msra.mxu0 0
        %318 = vmatpush.bf16.msra.mxu0 0
        %319 = vmatpush.bf16.msra.mxu0 %v310
        %320 = vmatmul.bf16.gmra.mxu0 %v307
        %v321 = vpop.f32.mrf.mxu0
        %v322 = vadd.f32 %v280, %v321
        %v323 = vpop.f32.mrf.mxu0
        %v324 = vadd.f32 %v282, %v323
        %325 = vdwg.mxu0
        %v326 = vld [vmem:[%s249 + $0x4] sm:$0xf]
        %v327 = vld [vmem:[%s249 + $0x8] sm:$0xf]
        %v328 = vld [vmem:[%s249 + $0xc] sm:$0x1]
        %s329 = scalar_lea.vmem %s1, 4
        %v330 = vld [vmem:[%s329] sm:$0x3]
        %v334 = vunpack.c.l.b16 %v326
        %v335 = vunpack.c.l.b16 %v327
        %v336 = vunpack.c.l.b16 %v328
        %v337 = vpack.c.b16 %v335, %v334
        %v338 = vpack.c.b16 %v336, %v336
        %vm339 = vsmask.f32 7424
        %v341 = vshrl.u32 %v337, 16
        %v343 = vshll.u32 %v337, 16
        %v345 = vrot.slane %v343, 1
        %v346 = vor.u32 %v341, %v345
        %v348 = vshll.u32 %v338, 16
        %v350 = vrot.slane %v348, 1
        %v351 = vsel %vm339, %v346, %v350
        %v353 = vsel %vm262, %v351, 0
        %v356 = vsel %vm266, %v330, 0
        %358 = vmatpush.bf16.msra.mxu0 0
        %359 = vmatpush.bf16.msra.mxu0 0
        %360 = vmatpush.bf16.msra.mxu0 0
        %361 = vmatpush.bf16.msra.mxu0 0
        %362 = vmatpush.bf16.msra.mxu0 0
        %363 = vmatpush.bf16.msra.mxu0 0
        %364 = vmatpush.bf16.msra.mxu0 0
        %365 = vmatpush.bf16.msra.mxu0 %v356
        %366 = vmatmul.bf16.gmra.mxu0 %v353
        %v367 = vpop.f32.mrf.mxu0
        %v368 = vadd.f32 0.0, %v367
        %v369 = vpop.f32.mrf.mxu0
        %v370 = vadd.f32 0.0, %v369
        %371 = vdwg.mxu0
        %v372 = vadd.f32 %v322, %v368
        %v373 = vadd.f32 %v324, %v370
        %v374 = vld [vmem:[%s249 + $0x4] sm:$0xe]
        %s375 = scalar_lea.vmem %s1, 6
        %v376 = vld [vmem:[%s375] sm:$0x3]
        %v378 = vunpack.c.l.b16 %v374
        %v379 = vpack.c.b16 %v335, %v378
        %vm380 = vcmask 1046528
        %v381 = vrot.slane %v379, 1
        %v382 = vrot.slane %v338, 1
        %v383 = vsel %vm380, %v381, %v382
        %v385 = vsel %vm262, %v383, 0
        %v388 = vsel %vm266, %v376, 0
        %390 = vmatpush.bf16.msra.mxu0 0
        %391 = vmatpush.bf16.msra.mxu0 0
        %392 = vmatpush.bf16.msra.mxu0 0
        %393 = vmatpush.bf16.msra.mxu0 0
        %394 = vmatpush.bf16.msra.mxu0 0
        %395 = vmatpush.bf16.msra.mxu0 0
        %396 = vmatpush.bf16.msra.mxu0 0
        %397 = vmatpush.bf16.msra.mxu0 %v388
        %398 = vmatmul.bf16.gmra.mxu0 %v385
        %v399 = vpop.f32.mrf.mxu0
        %v400 = vadd.f32 0.0, %v399
        %v401 = vpop.f32.mrf.mxu0
        %v402 = vadd.f32 0.0, %v401
        %403 = vdwg.mxu0
        %v404 = vadd.f32 %v372, %v400
        %v405 = vadd.f32 %v373, %v402
        %v406 = vld [vmem:[%s249 + $0xc] sm:$0x3]
        %s407 = scalar_lea.vmem %s1, 8
        %v408 = vld [vmem:[%s407] sm:$0x3]
        %v410 = vunpack.c.l.b16 %v406
        %v411 = vpack.c.b16 %v410, %v410
        %vm412 = vsmask.f32 6400
        %v414 = vshrl.u32 %v379, 16
        %v416 = vrot.slane %v414, 1
        %v417 = vshll.u32 %v379, 16
        %v419 = vrot.slane %v417, 2
        %v420 = vor.u32 %v416, %v419
        %v422 = vshrl.u32 %v411, 16
        %v424 = vrot.slane %v422, 1
        %v425 = vshll.u32 %v411, 16
        %v427 = vrot.slane %v425, 2
        %v428 = vor.u32 %v424, %v427
        %v429 = vsel %vm412, %v420, %v428
        %v431 = vsel %vm262, %v429, 0
        %v434 = vsel %vm266, %v408, 0
        %436 = vmatpush.bf16.msra.mxu0 0
        %437 = vmatpush.bf16.msra.mxu0 0
        %438 = vmatpush.bf16.msra.mxu0 0
        %439 = vmatpush.bf16.msra.mxu0 0
        %440 = vmatpush.bf16.msra.mxu0 0
        %441 = vmatpush.bf16.msra.mxu0 0
        %442 = vmatpush.bf16.msra.mxu0 0
        %443 = vmatpush.bf16.msra.mxu0 %v434
        %444 = vmatmul.bf16.gmra.mxu0 %v431
        %v445 = vpop.f32.mrf.mxu0
        %v446 = vadd.f32 0.0, %v445
        %v447 = vpop.f32.mrf.mxu0
        %v448 = vadd.f32 0.0, %v447
        %449 = vdwg.mxu0
        %v450 = vadd.f32 %v404, %v446
        %v451 = vadd.f32 %v405, %v448
        %v452 = vld [vmem:[%s249 + $0x4] sm:$0xc]
        %s453 = scalar_lea.vmem %s1, 10
        %v454 = vld [vmem:[%s453] sm:$0x3]
        %v456 = vunpack.c.l.b16 %v452
        %v457 = vpack.c.b16 %v335, %v456
        %vm458 = vcmask 1045504
        %v459 = vrot.slane %v457, 2
        %v460 = vrot.slane %v411, 2
        %v461 = vsel %vm458, %v459, %v460
        %v463 = vsel %vm262, %v461, 0
        %v466 = vsel %vm266, %v454, 0
        %468 = vmatpush.bf16.msra.mxu0 0
        %469 = vmatpush.bf16.msra.mxu0 0
        %470 = vmatpush.bf16.msra.mxu0 0
        %471 = vmatpush.bf16.msra.mxu0 0
        %472 = vmatpush.bf16.msra.mxu0 0
        %473 = vmatpush.bf16.msra.mxu0 0
        %474 = vmatpush.bf16.msra.mxu0 0
        %475 = vmatpush.bf16.msra.mxu0 %v466
        %476 = vmatmul.bf16.gmra.mxu0 %v463
        %v477 = vpop.f32.mrf.mxu0
        %v478 = vadd.f32 0.0, %v477
        %v479 = vpop.f32.mrf.mxu0
        %v480 = vadd.f32 0.0, %v479
        %481 = vdwg.mxu0
        %v482 = vadd.f32 %v450, %v478
        %v483 = vadd.f32 %v451, %v480
        %v484 = vld [vmem:[%s249 + $0xc] sm:$0x7]
        %s485 = scalar_lea.vmem %s1, 12
        %v486 = vld [vmem:[%s485] sm:$0x3]
        %v488 = vunpack.c.l.b16 %v484
        %v489 = vpack.c.b16 %v488, %v488
        %vm490 = vsmask.f32 5376
        %v492 = vshrl.u32 %v457, 16
        %v494 = vrot.slane %v492, 2
        %v495 = vshll.u32 %v457, 16
        %v497 = vrot.slane %v495, 3
        %v498 = vor.u32 %v494, %v497
        %v500 = vshrl.u32 %v489, 16
        %v502 = vrot.slane %v500, 2
        %v503 = vshll.u32 %v489, 16
        %v505 = vrot.slane %v503, 3
        %v506 = vor.u32 %v502, %v505
        %v507 = vsel %vm490, %v498, %v506
        %v509 = vsel %vm262, %v507, 0
        %v512 = vsel %vm266, %v486, 0
        %514 = vmatpush.bf16.msra.mxu0 0
        %515 = vmatpush.bf16.msra.mxu0 0
        %516 = vmatpush.bf16.msra.mxu0 0
        %517 = vmatpush.bf16.msra.mxu0 0
        %518 = vmatpush.bf16.msra.mxu0 0
        %519 = vmatpush.bf16.msra.mxu0 0
        %520 = vmatpush.bf16.msra.mxu0 0
        %521 = vmatpush.bf16.msra.mxu0 %v512
        %522 = vmatmul.bf16.gmra.mxu0 %v509
        %v523 = vpop.f32.mrf.mxu0
        %v524 = vadd.f32 0.0, %v523
        %v525 = vpop.f32.mrf.mxu0
        %v526 = vadd.f32 0.0, %v525
        %527 = vdwg.mxu0
        %v528 = vadd.f32 %v482, %v524
        %v529 = vadd.f32 %v483, %v526
        %v530 = vld [vmem:[%s249 + $0x4] sm:$0x8]
        %s531 = scalar_lea.vmem %s1, 14
        %v532 = vld [vmem:[%s531] sm:$0x3]
        %v534 = vunpack.c.l.b16 %v530
        %v535 = vpack.c.b16 %v335, %v534
        %vm536 = vcmask 1044480
        %v537 = vrot.slane %v535, 3
        %v538 = vrot.slane %v489, 3
        %v539 = vsel %vm536, %v537, %v538
        %v541 = vsel %vm262, %v539, 0
        %v544 = vsel %vm266, %v532, 0
        %546 = vmatpush.bf16.msra.mxu0 0
        %547 = vmatpush.bf16.msra.mxu0 0
        %548 = vmatpush.bf16.msra.mxu0 0
        %549 = vmatpush.bf16.msra.mxu0 0
        %550 = vmatpush.bf16.msra.mxu0 0
        %551 = vmatpush.bf16.msra.mxu0 0
        %552 = vmatpush.bf16.msra.mxu0 0
        %553 = vmatpush.bf16.msra.mxu0 %v544
        %554 = vmatmul.bf16.gmra.mxu0 %v541
        %v555 = vpop.f32.mrf.mxu0
        %v556 = vadd.f32 0.0, %v555
        %v557 = vpop.f32.mrf.mxu0
        %v558 = vadd.f32 0.0, %v557
        %559 = vdwg.mxu0
        %v560 = vadd.f32 %v528, %v556
        %v561 = vadd.f32 %v529, %v558
        %v562 = vld [vmem:[%s249 + $0xc] sm:$0xf]
        %s563 = scalar_lea.vmem %s1, 16
        %v564 = vld [vmem:[%s563] sm:$0x3]
        %v566 = vunpack.c.l.b16 %v562
        %v567 = vpack.c.b16 %v566, %v566
        %v569 = vshrl.u32 %v535, 16
        %v571 = vrot.slane %v569, 3
        %v572 = vshll.u32 %v535, 16
        %v574 = vrot.slane %v572, 4
        %v575 = vor.u32 %v571, %v574
        %v577 = vshrl.u32 %v567, 16
        %v579 = vrot.slane %v577, 3
        %v580 = vshll.u32 %v567, 16
        %v582 = vrot.slane %v580, 4
        %v583 = vor.u32 %v579, %v582
        %v584 = vsel %vm288, %v575, %v583
        %v586 = vsel %vm262, %v584, 0
        %v589 = vsel %vm266, %v564, 0
        %591 = vmatpush.bf16.msra.mxu0 0
        %592 = vmatpush.bf16.msra.mxu0 0
        %593 = vmatpush.bf16.msra.mxu0 0
        %594 = vmatpush.bf16.msra.mxu0 0
        %595 = vmatpush.bf16.msra.mxu0 0
        %596 = vmatpush.bf16.msra.mxu0 0
        %597 = vmatpush.bf16.msra.mxu0 0
        %598 = vmatpush.bf16.msra.mxu0 %v589
        %599 = vmatmul.bf16.gmra.mxu0 %v586
        %v600 = vpop.f32.mrf.mxu0
        %v601 = vadd.f32 0.0, %v600
        %v602 = vpop.f32.mrf.mxu0
        %v603 = vadd.f32 0.0, %v602
        %604 = vdwg.mxu0
        %v605 = vadd.f32 %v560, %v601
        %v606 = vadd.f32 %v561, %v603
        %s607 = scalar_lea.vmem %s1, 18
        %v608 = vld [vmem:[%s607] sm:$0x3]
        %v609 = vpack.c.b16 %v566, %v335
        %v611 = vsel %vm262, %v609, 0
        %v614 = vsel %vm266, %v608, 0
        %616 = vmatpush.bf16.msra.mxu0 0
        %617 = vmatpush.bf16.msra.mxu0 0
        %618 = vmatpush.bf16.msra.mxu0 0
        %619 = vmatpush.bf16.msra.mxu0 0
        %620 = vmatpush.bf16.msra.mxu0 0
        %621 = vmatpush.bf16.msra.mxu0 0
        %622 = vmatpush.bf16.msra.mxu0 0
        %623 = vmatpush.bf16.msra.mxu0 %v614
        %624 = vmatmul.bf16.gmra.mxu0 %v611
        %v625 = vpop.f32.mrf.mxu0
        %v626 = vadd.f32 0.0, %v625
        %v627 = vpop.f32.mrf.mxu0
        %v628 = vadd.f32 0.0, %v627
        %629 = vdwg.mxu0
        %v630 = vadd.f32 %v605, %v626
        %v631 = vadd.f32 %v606, %v628
        %v632 = vld [vmem:[%s249 + $0x8] sm:$0xf]
        %v633 = vld [vmem:[%s249 + $0xc] sm:$0xf]
        %v634 = vld [vmem:[%s249 + $0x10] sm:$0x1]
        %s635 = scalar_lea.vmem %s1, 20
        %v636 = vld [vmem:[%s635] sm:$0x3]
        %v640 = vunpack.c.l.b16 %v632
        %v641 = vunpack.c.l.b16 %v633
        %v642 = vunpack.c.l.b16 %v634
        %v643 = vpack.c.b16 %v641, %v640
        %v644 = vpack.c.b16 %v642, %v642
        %v646 = vshrl.u32 %v643, 16
        %v648 = vshll.u32 %v643, 16
        %v650 = vrot.slane %v648, 1
        %v651 = vor.u32 %v646, %v650
        %v653 = vshll.u32 %v644, 16
        %v655 = vrot.slane %v653, 1
        %v656 = vsel %vm339, %v651, %v655
        %v658 = vsel %vm262, %v656, 0
        %v661 = vsel %vm266, %v636, 0
        %663 = vmatpush.bf16.msra.mxu0 0
        %664 = vmatpush.bf16.msra.mxu0 0
        %665 = vmatpush.bf16.msra.mxu0 0
        %666 = vmatpush.bf16.msra.mxu0 0
        %667 = vmatpush.bf16.msra.mxu0 0
        %668 = vmatpush.bf16.msra.mxu0 0
        %669 = vmatpush.bf16.msra.mxu0 0
        %670 = vmatpush.bf16.msra.mxu0 %v661
        %671 = vmatmul.bf16.gmra.mxu0 %v658
        %v672 = vpop.f32.mrf.mxu0
        %v673 = vadd.f32 0.0, %v672
        %v674 = vpop.f32.mrf.mxu0
        %v675 = vadd.f32 0.0, %v674
        %676 = vdwg.mxu0
        %v677 = vadd.f32 %v630, %v673
        %v678 = vadd.f32 %v631, %v675
        %v679 = vld [vmem:[%s249 + $0x8] sm:$0xe]
        %s680 = scalar_lea.vmem %s1, 22
        %v681 = vld [vmem:[%s680] sm:$0x3]
        %v683 = vunpack.c.l.b16 %v679
        %v684 = vpack.c.b16 %v641, %v683
        %v685 = vrot.slane %v684, 1
        %v686 = vrot.slane %v644, 1
        %v687 = vsel %vm380, %v685, %v686
        %v689 = vsel %vm262, %v687, 0
        %v692 = vsel %vm266, %v681, 0
        %694 = vmatpush.bf16.msra.mxu0 0
        %695 = vmatpush.bf16.msra.mxu0 0
        %696 = vmatpush.bf16.msra.mxu0 0
        %697 = vmatpush.bf16.msra.mxu0 0
        %698 = vmatpush.bf16.msra.mxu0 0
        %699 = vmatpush.bf16.msra.mxu0 0
        %700 = vmatpush.bf16.msra.mxu0 0
        %701 = vmatpush.bf16.msra.mxu0 %v692
        %702 = vmatmul.bf16.gmra.mxu0 %v689
        %v703 = vpop.f32.mrf.mxu0
        %v704 = vadd.f32 0.0, %v703
        %v705 = vpop.f32.mrf.mxu0
        %v706 = vadd.f32 0.0, %v705
        %707 = vdwg.mxu0
        %v708 = vadd.f32 %v677, %v704
        %v709 = vadd.f32 %v678, %v706
        %v710 = vld [vmem:[%s249 + $0x10] sm:$0x3]
        %s711 = scalar_lea.vmem %s1, 24
        %v712 = vld [vmem:[%s711] sm:$0x3]
        %v714 = vunpack.c.l.b16 %v710
        %v715 = vpack.c.b16 %v714, %v714
        %v717 = vshrl.u32 %v684, 16
        %v719 = vrot.slane %v717, 1
        %v720 = vshll.u32 %v684, 16
        %v722 = vrot.slane %v720, 2
        %v723 = vor.u32 %v719, %v722
        %v725 = vshrl.u32 %v715, 16
        %v727 = vrot.slane %v725, 1
        %v728 = vshll.u32 %v715, 16
        %v730 = vrot.slane %v728, 2
        %v731 = vor.u32 %v727, %v730
        %v732 = vsel %vm412, %v723, %v731
        %v734 = vsel %vm262, %v732, 0
        %v737 = vsel %vm266, %v712, 0
        %739 = vmatpush.bf16.msra.mxu0 0
        %740 = vmatpush.bf16.msra.mxu0 0
        %741 = vmatpush.bf16.msra.mxu0 0
        %742 = vmatpush.bf16.msra.mxu0 0
        %743 = vmatpush.bf16.msra.mxu0 0
        %744 = vmatpush.bf16.msra.mxu0 0
        %745 = vmatpush.bf16.msra.mxu0 0
        %746 = vmatpush.bf16.msra.mxu0 %v737
        %747 = vmatmul.bf16.gmra.mxu0 %v734
        %v748 = vpop.f32.mrf.mxu0
        %v749 = vadd.f32 0.0, %v748
        %v750 = vpop.f32.mrf.mxu0
        %v751 = vadd.f32 0.0, %v750
        %752 = vdwg.mxu0
        %v753 = vadd.f32 %v708, %v749
        %v754 = vadd.f32 %v709, %v751
        %v755 = vld [vmem:[%s249 + $0x8] sm:$0xc]
        %s756 = scalar_lea.vmem %s1, 26
        %v757 = vld [vmem:[%s756] sm:$0x3]
        %v759 = vunpack.c.l.b16 %v755
        %v760 = vpack.c.b16 %v641, %v759
        %v761 = vrot.slane %v760, 2
        %v762 = vrot.slane %v715, 2
        %v763 = vsel %vm458, %v761, %v762
        %v765 = vsel %vm262, %v763, 0
        %v768 = vsel %vm266, %v757, 0
        %770 = vmatpush.bf16.msra.mxu0 0
        %771 = vmatpush.bf16.msra.mxu0 0
        %772 = vmatpush.bf16.msra.mxu0 0
        %773 = vmatpush.bf16.msra.mxu0 0
        %774 = vmatpush.bf16.msra.mxu0 0
        %775 = vmatpush.bf16.msra.mxu0 0
        %776 = vmatpush.bf16.msra.mxu0 0
        %777 = vmatpush.bf16.msra.mxu0 %v768
        %778 = vmatmul.bf16.gmra.mxu0 %v765
        %v779 = vpop.f32.mrf.mxu0
        %v780 = vadd.f32 0.0, %v779
        %v781 = vpop.f32.mrf.mxu0
        %v782 = vadd.f32 0.0, %v781
        %783 = vdwg.mxu0
        %v784 = vadd.f32 %v753, %v780
        %v785 = vadd.f32 %v754, %v782
        %v786 = vld [vmem:[%s249 + $0x10] sm:$0x7]
        %s787 = scalar_lea.vmem %s1, 28
        %v788 = vld [vmem:[%s787] sm:$0x3]
        %v790 = vunpack.c.l.b16 %v786
        %v791 = vpack.c.b16 %v790, %v790
        %v793 = vshrl.u32 %v760, 16
        %v795 = vrot.slane %v793, 2
        %v796 = vshll.u32 %v760, 16
        %v798 = vrot.slane %v796, 3
        %v799 = vor.u32 %v795, %v798
        %v801 = vshrl.u32 %v791, 16
        %v803 = vrot.slane %v801, 2
        %v804 = vshll.u32 %v791, 16
        %v806 = vrot.slane %v804, 3
        %v807 = vor.u32 %v803, %v806
        %v808 = vsel %vm490, %v799, %v807
        %v810 = vsel %vm262, %v808, 0
        %v813 = vsel %vm266, %v788, 0
        %815 = vmatpush.bf16.msra.mxu0 0
        %816 = vmatpush.bf16.msra.mxu0 0
        %817 = vmatpush.bf16.msra.mxu0 0
        %818 = vmatpush.bf16.msra.mxu0 0
        %819 = vmatpush.bf16.msra.mxu0 0
        %820 = vmatpush.bf16.msra.mxu0 0
        %821 = vmatpush.bf16.msra.mxu0 0
        %822 = vmatpush.bf16.msra.mxu0 %v813
        %823 = vmatmul.bf16.gmra.mxu0 %v810
        %v824 = vpop.f32.mrf.mxu0
        %v825 = vadd.f32 0.0, %v824
        %v826 = vpop.f32.mrf.mxu0
        %v827 = vadd.f32 0.0, %v826
        %828 = vdwg.mxu0
        %v829 = vadd.f32 %v784, %v825
        %v830 = vadd.f32 %v785, %v827
        %v831 = vld [vmem:[%s249 + $0x8] sm:$0x8]
        %s832 = scalar_lea.vmem %s1, 30
        %v833 = vld [vmem:[%s832] sm:$0x3]
        %v835 = vunpack.c.l.b16 %v831
        %v836 = vpack.c.b16 %v641, %v835
        %v837 = vrot.slane %v836, 3
        %v838 = vrot.slane %v791, 3
        %v839 = vsel %vm536, %v837, %v838
        %v841 = vsel %vm262, %v839, 0
        %v844 = vsel %vm266, %v833, 0
        %846 = vmatpush.bf16.msra.mxu0 0
        %847 = vmatpush.bf16.msra.mxu0 0
        %848 = vmatpush.bf16.msra.mxu0 0
        %849 = vmatpush.bf16.msra.mxu0 0
        %850 = vmatpush.bf16.msra.mxu0 0
        %851 = vmatpush.bf16.msra.mxu0 0
        %852 = vmatpush.bf16.msra.mxu0 0
        %853 = vmatpush.bf16.msra.mxu0 %v844
        %854 = vmatmul.bf16.gmra.mxu0 %v841
        %v855 = vpop.f32.mrf.mxu0
        %v856 = vadd.f32 0.0, %v855
        %v857 = vpop.f32.mrf.mxu0
        %v858 = vadd.f32 0.0, %v857
        %859 = vdwg.mxu0
        %v860 = vadd.f32 %v829, %v856
        %v861 = vadd.f32 %v830, %v858
        %v862 = vld [vmem:[%s249 + $0x10] sm:$0xf]
        %s863 = scalar_lea.vmem %s1, 32
        %v864 = vld [vmem:[%s863] sm:$0x3]
        %v866 = vunpack.c.l.b16 %v862
        %v867 = vpack.c.b16 %v866, %v866
        %v869 = vshrl.u32 %v836, 16
        %v871 = vrot.slane %v869, 3
        %v872 = vshll.u32 %v836, 16
        %v874 = vrot.slane %v872, 4
        %v875 = vor.u32 %v871, %v874
        %v877 = vshrl.u32 %v867, 16
        %v879 = vrot.slane %v877, 3
        %v880 = vshll.u32 %v867, 16
        %v882 = vrot.slane %v880, 4
        %v883 = vor.u32 %v879, %v882
        %v884 = vsel %vm288, %v875, %v883
        %v886 = vsel %vm262, %v884, 0
        %v889 = vsel %vm266, %v864, 0
        %891 = vmatpush.bf16.msra.mxu0 0
        %892 = vmatpush.bf16.msra.mxu0 0
        %893 = vmatpush.bf16.msra.mxu0 0
        %894 = vmatpush.bf16.msra.mxu0 0
        %895 = vmatpush.bf16.msra.mxu0 0
        %896 = vmatpush.bf16.msra.mxu0 0
        %897 = vmatpush.bf16.msra.mxu0 0
        %898 = vmatpush.bf16.msra.mxu0 %v889
        %899 = vmatmul.bf16.gmra.mxu0 %v886
        %v900 = vpop.f32.mrf.mxu0
        %v901 = vadd.f32 0.0, %v900
        %v902 = vpop.f32.mrf.mxu0
        %v903 = vadd.f32 0.0, %v902
        %904 = vdwg.mxu0
        %v905 = vadd.f32 %v860, %v901
        %v906 = vadd.f32 %v861, %v903
        %s907 = scalar_lea.vmem %s1, 34
        %v908 = vld [vmem:[%s907] sm:$0x3]
        %v909 = vpack.c.b16 %v866, %v641
        %v911 = vsel %vm262, %v909, 0
        %v914 = vsel %vm266, %v908, 0
        %916 = vmatpush.bf16.msra.mxu0 0
        %917 = vmatpush.bf16.msra.mxu0 0
        %918 = vmatpush.bf16.msra.mxu0 0
        %919 = vmatpush.bf16.msra.mxu0 0
        %920 = vmatpush.bf16.msra.mxu0 0
        %921 = vmatpush.bf16.msra.mxu0 0
        %922 = vmatpush.bf16.msra.mxu0 0
        %923 = vmatpush.bf16.msra.mxu0 %v914
        %924 = vmatmul.bf16.gmra.mxu0 %v911
        %v925 = vpop.f32.mrf.mxu0
        %v926 = vadd.f32 0.0, %v925
        %v927 = vpop.f32.mrf.mxu0
        %v928 = vadd.f32 0.0, %v927
        %929 = vdwg.mxu0
        %v930 = vadd.f32 %v905, %v926
        %v931 = vadd.f32 %v906, %v928
        %v932 = vld [vmem:[%s249 + $0xc] sm:$0xf]
        %v933 = vld [vmem:[%s249 + $0x10] sm:$0xf]
        %v934 = vld [vmem:[%s249 + $0x14] sm:$0x1]
        %s935 = scalar_lea.vmem %s1, 36
        %v936 = vld [vmem:[%s935] sm:$0x3]
        %v940 = vunpack.c.l.b16 %v932
        %v941 = vunpack.c.l.b16 %v933
        %v942 = vunpack.c.l.b16 %v934
        %v943 = vpack.c.b16 %v941, %v940
        %v944 = vpack.c.b16 %v942, %v942
        %v946 = vshrl.u32 %v943, 16
        %v948 = vshll.u32 %v943, 16
        %v950 = vrot.slane %v948, 1
        %v951 = vor.u32 %v946, %v950
        %v953 = vshll.u32 %v944, 16
        %v955 = vrot.slane %v953, 1
        %v956 = vsel %vm339, %v951, %v955
        %v958 = vsel %vm262, %v956, 0
        %v961 = vsel %vm266, %v936, 0
        %963 = vmatpush.bf16.msra.mxu0 0
        %964 = vmatpush.bf16.msra.mxu0 0
        %965 = vmatpush.bf16.msra.mxu0 0
        %966 = vmatpush.bf16.msra.mxu0 0
        %967 = vmatpush.bf16.msra.mxu0 0
        %968 = vmatpush.bf16.msra.mxu0 0
        %969 = vmatpush.bf16.msra.mxu0 0
        %970 = vmatpush.bf16.msra.mxu0 %v961
        %971 = vmatmul.bf16.gmra.mxu0 %v958
        %v972 = vpop.f32.mrf.mxu0
        %v973 = vadd.f32 0.0, %v972
        %v974 = vpop.f32.mrf.mxu0
        %v975 = vadd.f32 0.0, %v974
        %976 = vdwg.mxu0
        %v977 = vadd.f32 %v930, %v973
        %v978 = vadd.f32 %v931, %v975
        %v979 = vld [vmem:[%s2] sm:$0x1]
        %v981 = vperm.slane %v979, 0
        %v983 = vadd.f32 %v977, %v981
        %v984 = vadd.f32 %v978, %v981
        %v985 = vxor.u32 %v983, 2147483648
        %v986 = vxor.u32 %v984, 2147483648
        %v987 = vmul.f32 %v985, 1.442695
        %v988 = vpow.pop %v987
        %v989 = vmul.f32 %v986, 1.442695
        %v990 = vpow.pop %v989
        %v991 = vadd.f32 %v988, 1.0
        %v992 = vadd.f32 %v990, 1.0
        %v993 = vrcp.pop %v991
        %v994 = vmul.f32 %v991, %v993
        %v995 = vsub.f32 1.0, %v994
        %v996 = vmul.f32 %v993, %v995
        %v997 = vadd.f32 %v993, %v996
        %vm998 = vweird.f32 %v991
        %vm999 = vweird.f32 %v993
        %vm1000 = vmor %vm998, %vm999
        %v1001 = vsel %vm1000, %v993, %v997
        %v1002 = vand.u32 2147483647, %v991
        %vm1003 = vcmp.eq.f32.partialorder %v1002, 8.507059e+37
        %v1004 = vand.u32 %v991, 2147483648
        %v1005 = vor.u32 1.1754944e-38, %v1004
        %v1006 = vsel %vm1003, %v1005, %v1001
        %v1007 = vmul.f32 1.0, %v1006
        %v1008 = vrcp.pop %v992
        %v1009 = vmul.f32 %v992, %v1008
        %v1010 = vsub.f32 1.0, %v1009
        %v1011 = vmul.f32 %v1008, %v1010
        %v1012 = vadd.f32 %v1008, %v1011
        %vm1013 = vweird.f32 %v992
        %vm1014 = vweird.f32 %v1008
        %vm1015 = vmor %vm1013, %vm1014
        %v1016 = vsel %vm1015, %v1008, %v1012
        %v1017 = vand.u32 2147483647, %v992
        %vm1018 = vcmp.eq.f32.partialorder %v1017, 8.507059e+37
        %v1019 = vand.u32 %v992, 2147483648
        %v1020 = vor.u32 1.1754944e-38, %v1019
        %v1021 = vsel %vm1018, %v1020, %v1016
        %v1022 = vmul.f32 1.0, %v1021
        %v1023 = vmul.f32 %v983, %v1007
        %v1024 = vmul.f32 %v984, %v1022
        %v1025 = vpack.c.bf16 %v1024, %v1023
        %v1026 = vld [vmem:[%s3] sm:$0xf]
        %v1027 = vld [vmem:[%s3 + $0x4] sm:$0xf]
        %v1028 = vld [vmem:[%s3 + $0x8] sm:$0xf]
        %v1029 = vld [vmem:[%s3 + $0xc] sm:$0xf]
        %v1030 = vld [vmem:[%s3 + $0x10] sm:$0xf]
        %v1031 = vld [vmem:[%s4] sm:$0x3]
        %v1033 = vsel %vm266, %v1031, 0
        %1035 = vmatpush.bf16.msra.mxu0 0
        %1036 = vmatpush.bf16.msra.mxu0 0
        %1037 = vmatpush.bf16.msra.mxu0 0
        %1038 = vmatpush.bf16.msra.mxu0 0
        %1039 = vmatpush.bf16.msra.mxu0 0
        %1040 = vmatpush.bf16.msra.mxu0 0
        %1041 = vmatpush.bf16.msra.mxu0 0
        %1042 = vmatpush.bf16.msra.mxu0 %v1033
        %1043 = vmatmul.bf16.gmra.mxu0 %v611
        %v1044 = vpop.f32.mrf.mxu0
        %v1045 = vadd.f32 0.0, %v1044
        %v1046 = vpop.f32.mrf.mxu0
        %v1047 = vadd.f32 0.0, %v1046
        %1048 = vdwg.mxu0
        %v1054 = vunpack.c.l.b16 %v1026
        %v1055 = vunpack.c.l.b16 %v1027
        %v1056 = vunpack.c.l.b16 %v1028
        %v1057 = vunpack.c.l.b16 %v1029
        %v1058 = vunpack.c.l.b16 %v1030
        %v1059 = vpack.c.b16 %v1055, %v1054
        %v1060 = vpack.c.b16 %v1057, %v1056
        %v1061 = vpack.c.b16 %v1058, %v1058
        %vm1064 = vcmask 326656
        %v1066 = vsel %vm1064, %v1025, 0
        %vm1068 = vcmask 1043456
        %v1070 = vsel %vm1068, %v1061, 0
        %1072 = vmatpush.bf16.msra.mxu0 0
        %1073 = vmatpush.bf16.msra.mxu0 0
        %1074 = vmatpush.bf16.msra.mxu0 0
        %1075 = vmatpush.bf16.msra.mxu0 0
        %1076 = vmatpush.bf16.msra.mxu0 0
        %1077 = vmatpush.bf16.msra.mxu0 %v1070
        %1078 = vmatpush.bf16.msra.mxu0 %v1060
        %1079 = vmatpush.bf16.msra.mxu0 %v1059
        %1080 = vmatmul.bf16.gmra.mxu0 %v1066
        %v1081 = vpop.f32.mrf.mxu0
        %v1082 = vadd.f32 %v1045, %v1081
        %v1083 = vpop.f32.mrf.mxu0
        %v1084 = vadd.f32 %v1047, %v1083
        %1085 = vdwg.mxu0
        %v1086 = vld [vmem:[%s5] sm:$0x1]
        %v1088 = vperm.slane %v1086, 0
        %v1090 = vadd.f32 %v1082, %v1088
        %v1091 = vadd.f32 %v1084, %v1088
        %v1092 = vxor.u32 %v1090, 2147483648
        %v1093 = vxor.u32 %v1091, 2147483648
        %v1094 = vmul.f32 %v1092, 1.442695
        %v1095 = vpow.pop %v1094
        %v1096 = vmul.f32 %v1093, 1.442695
        %v1097 = vpow.pop %v1096
        %v1098 = vadd.f32 %v1095, 1.0
        %v1099 = vadd.f32 %v1097, 1.0
        %v1100 = vrcp.pop %v1098
        %v1101 = vmul.f32 %v1098, %v1100
        %v1102 = vsub.f32 1.0, %v1101
        %v1103 = vmul.f32 %v1100, %v1102
        %v1104 = vadd.f32 %v1100, %v1103
        %vm1105 = vweird.f32 %v1098
        %vm1106 = vweird.f32 %v1100
        %vm1107 = vmor %vm1105, %vm1106
        %v1108 = vsel %vm1107, %v1100, %v1104
        %v1109 = vand.u32 2147483647, %v1098
        %vm1110 = vcmp.eq.f32.partialorder %v1109, 8.507059e+37
        %v1111 = vand.u32 %v1098, 2147483648
        %v1112 = vor.u32 1.1754944e-38, %v1111
        %v1113 = vsel %vm1110, %v1112, %v1108
        %v1114 = vmul.f32 1.0, %v1113
        %v1115 = vrcp.pop %v1099
        %v1116 = vmul.f32 %v1099, %v1115
        %v1117 = vsub.f32 1.0, %v1116
        %v1118 = vmul.f32 %v1115, %v1117
        %v1119 = vadd.f32 %v1115, %v1118
        %vm1120 = vweird.f32 %v1099
        %vm1121 = vweird.f32 %v1115
        %vm1122 = vmor %vm1120, %vm1121
        %v1123 = vsel %vm1122, %v1115, %v1119
        %v1124 = vand.u32 2147483647, %v1099
        %vm1125 = vcmp.eq.f32.partialorder %v1124, 8.507059e+37
        %v1126 = vand.u32 %v1099, 2147483648
        %v1127 = vor.u32 1.1754944e-38, %v1126
        %v1128 = vsel %vm1125, %v1127, %v1123
        %v1129 = vmul.f32 1.0, %v1128
        %v1130 = vmul.f32 %v1090, %v1114
        %v1131 = vmul.f32 %v1091, %v1129
        %vm1132 = vcmask 64512
        %1133 = vst.msk [vmem:[#allocation2] sm:$0xff] %vm1132, %v1130
        %1134 = vst.msk [vmem:[#allocation2 + $0x8] sm:$0xff] %vm1132, %v1131
        %v1135 = vld [vmem:[#allocation2] ss:$2 sm:$0xff]
        %s1136 = scalar_lea.vmem [#allocation2], 1
        %v1137 = vld [vmem:[%s1136] ss:$2 sm:$0xff]
        %v1138 = vmax.f32 %v1135, %v1137
        %1139 = vst.msk [vmem:[%s244] sm:$0xff] %vm1132, %v1138
        %s1140 = sand.u32 %s159, 1
        %s1141 = scalar_lea.sflag [#allocation4], %s1140
        %s1142 = sand.u32 %s159, 1
        %s1143 = smul.addr %s1142, 8
        %s1144 = scalar_lea.vmem [#allocation3], %s1143
        // Predicated region
        $region45: #{tpu_custom_call.1} parent=43 // pred_check
          %p1145 = pneg %p169
        $region46: #{tpu_custom_call.1} parent=43 // pred_check_branch
          %1147 = sbr.rel (%p1145) target = $region48
        $region47: #{tpu_custom_call.1} parent=43 // pred_region
          %1149 = vsyncadd %s1141, 0
          %s1150 = smul.addr %s20, 8
          %s1151 = scalar_lea.hbm %s6, %s1150
          %s1153 = sshll.u32 %s1144, 4
          %s1154 = int_to_ptr.vmem [resolvable:$true] %s1153
          %s1155 = sshll.u32 %s1151, 4
          %s1156 = int_to_ptr.hbm [resolvable:$true] %s1155
          %1158 = dma.vmem_to_hbm [thread:$0]  %s1154, 128, %s1156, %s1141
        $region48: #{tpu_custom_call.1} parent=43 // pred_fallthru
          _
      $region44: #{tpu_custom_call.1} parent=5 // pred_fallthru
        _
      %p1159 = scmp.le.s32.totalorder 2, %s15
      // Predicated region
      $region49: #{tpu_custom_call.1} parent=5 // pred_check
        %p1160 = pneg %p1159
      $region50: #{tpu_custom_call.1} parent=5 // pred_check_branch
        %1162 = sbr.rel (%p1160) target = $region52
      $region51: #{tpu_custom_call.1} parent=5 // pred_region
        %s1163 = ssub.s32 %s15, 2
        // Predicated region
        $region53: #{tpu_custom_call.1} parent=51 // pred_check
          %p1164 = pneg %p175
        $region54: #{tpu_custom_call.1} parent=51 // pred_check_branch
          %1166 = sbr.rel (%p1164) target = $region56
        $region55: #{tpu_custom_call.1} parent=51 // pred_region
          %s1167 = sand.u32 %s160, 1
          %s1168 = scalar_lea.sflag [#allocation4], %s1167
          %s1169 = sand.u32 %s160, 1
          %s1170 = smul.addr %s1169, 8
          %s1171 = scalar_lea.vmem [#allocation3], %s1170
          %1173 = dma.done %s1168, 128
        $region56: #{tpu_custom_call.1} parent=51 // pred_fallthru
          _
      $region52: #{tpu_custom_call.1} parent=5 // pred_fallthru
        _
    $region6: #{tpu_custom_call.1} parent=1 // loop_footer
      %s19 = sadd.s32 1, %s15
    $region7: #{tpu_custom_call.1} parent=1 // loop_footer_branch
      %14 = sbr.rel target = $region3
    $region8: #{tpu_custom_call.1} parent=1 // loop_exit
      _
    %1174 = vsyncpa [#allocation4], 1
    %s1175 = scalar_lea.sflag [#allocation4], 1
    %1176 = vsyncpa %s1175, 1

</llo_original>
